<compile_context>
chip_gen: v6e
topology: v6e:2x2x1
jax: 0.10.0
libtpu: 0.0.40
codegen_flags: <defaults>
</compile_context>

<pallas_src>
import functools

import jax
import jax.numpy as jnp
from jax.experimental import pallas as pl
from jax.experimental.pallas import tpu as pltpu


def _fused_mlp_kernel(num_inputs, num_mid, *refs):
    """Fused embedding-lookup + MLP.

    refs = (x_idx_ref,                      # (tile_b, num_inputs) int32, ids pre-shifted by j*vocab_p
            fused_ref,                      # (num_inputs*vocab_p, hidden_p) compute_dtype
            b0_ref,                         # (1, hidden_p) f32
            [w_mid_ref, b_mid_ref] * num_mid,
            w_out_ref, b_out_ref,           # (hidden_p, out_p), (1, out_p)
            out_ref)                        # (tile_b, out_dim) f32
    """
    x_idx_ref, fused_ref, b0_ref = refs[0], refs[1], refs[2]
    out_ref = refs[-1]
    params = refs[3:-1]

    ids = x_idx_ref[...]                                   # (tile_b, num_inputs)
    tile_b = ids.shape[0]
    k_tot = fused_ref.shape[0]                             # num_inputs * vocab_p

    # Single combined one-hot over the concatenated (shifted) vocab segments.
    lane_iota = jax.lax.broadcasted_iota(jnp.int32, (tile_b, k_tot), 1)
    hit = ids[:, 0:1] == lane_iota
    for j in range(1, num_inputs):
        hit = jnp.logical_or(hit, ids[:, j:j + 1] == lane_iota)
    onehot = hit.astype(fused_ref.dtype)                   # exact 0/1 in bf16

    # Embedding gather + concat + first Linear == one K=num_inputs*vocab_p matmul.
    h = jnp.dot(onehot, fused_ref[...], preferred_element_type=jnp.float32)
    h = jnp.tanh(h + b0_ref[...])                          # f32 bias + f32 tanh

    # Remaining ActivationLayers (Linear -> tanh).
    k = 0
    for _ in range(num_mid):
        w = params[k][...]
        b = params[k + 1][...]
        k += 2
        h = jnp.tanh(
            jnp.dot(h.astype(w.dtype), w, preferred_element_type=jnp.float32) + b)

    # Final Linear; store only the real output columns (masked vst is cheap,
    # and it removes the 128-lane-padded HBM writeback + wrapper slice pass).
    w = params[k][...]
    b = params[k + 1][...]
    res = jnp.dot(h.astype(w.dtype), w, preferred_element_type=jnp.float32) + b
    out_ref[...] = res[:, :out_ref.shape[1]].astype(out_ref.dtype)


def _pad_to(a, shape):
    return jnp.pad(a, [(0, t - s) for s, t in zip(a.shape, shape)])


def deep_neural_embedding_forward(X_idx, emb_table, weights, biases, *,
                                  compute_dtype=jnp.bfloat16, tile_b=None):
    """Forward pass of TorchDeepNeuralEmbeddingModel.

    X_idx:     (B, num_inputs) int32 token ids
    emb_table: (vocab, embed_dim) f32
    weights:   [W0 (num_inputs*embed_dim, hidden), W1 (hidden, hidden), ...,
                W_out (hidden, output)]   -- (in, out) layout (torch weight.T)
    biases:    matching vectors
    compute_dtype: dtype of MXU operands (bf16 default; f32 also supported).
                   Accumulation, biases and tanh stay in f32.
    """
    B, num_inputs = X_idx.shape
    vocab, embed_dim = emb_table.shape
    hidden = weights[0].shape[1]
    out_dim = weights[-1].shape[1]
    num_act = len(weights) - 1          # number of ActivationLayers (>= 1)
    num_mid = num_act - 1

    LANE = 128
    vocab_p = pl.cdiv(vocab, LANE) * LANE
    hidden_p = pl.cdiv(hidden, LANE) * LANE
    out_p = pl.cdiv(out_dim, LANE) * LANE
    k_tot = num_inputs * vocab_p

    # Batch tile: up to 1024 rows (amortizes ~0.35us/step grid overhead), but
    # keep at least 2 grid steps when the batch allows so both v7x TensorCores
    # get work.  Batch is padded to the tile so any B works.
    if tile_b is None:
        b_units = pl.cdiv(B, 128)                       # batch in 128-row units
        tile_b = min(8, max(1, pl.cdiv(b_units, 2))) * 128
    B_p = pl.cdiv(B, tile_b) * tile_b

    # ---- trace-time parameter prep (tiny, one XLA pass) --------------------
    # Fold the embedding table into the first Linear and flatten to 2-D:
    #   fused[j*vocab_p + v, :] = (emb_table @ W0[j*embed_dim:(j+1)*embed_dim, :])[v, :]
    w0 = weights[0].astype(jnp.float32).reshape(num_inputs, embed_dim, hidden)
    fused = jnp.einsum('ve,jeh->jvh', emb_table.astype(jnp.float32), w0)
    fused = _pad_to(fused, (num_inputs, vocab_p, hidden_p))
    fused = fused.reshape(k_tot, hidden_p).astype(compute_dtype)
    b0 = _pad_to(biases[0].reshape(1, -1), (1, hidden_p)).astype(jnp.float32)

    mids = []
    for w, b in zip(weights[1:num_act], biases[1:num_act]):
        mids.append(_pad_to(w, (hidden_p, hidden_p)).astype(compute_dtype))
        mids.append(_pad_to(b.reshape(1, -1), (1, hidden_p)).astype(jnp.float32))
    w_out = _pad_to(weights[-1], (hidden_p, out_p)).astype(compute_dtype)
    b_out = _pad_to(biases[-1].reshape(1, -1), (1, out_p)).astype(jnp.float32)

    # Shift ids by their segment offset (j*vocab_p) so the kernel builds one
    # combined one-hot; fold the shift into the same pass as the pad.
    offsets = (jnp.arange(num_inputs, dtype=jnp.int32) * vocab_p)[None, :]
    X_p = jnp.pad(X_idx.astype(jnp.int32) + offsets, ((0, B_p - B), (0, 0)))

    inputs = [X_p, fused, b0] + mids + [w_out, b_out]
    in_specs = [
        pl.BlockSpec((tile_b, num_inputs), lambda i: (i, 0)),
        pl.BlockSpec((k_tot, hidden_p), lambda i: (0, 0)),
        pl.BlockSpec((1, hidden_p), lambda i: (0, 0)),
    ]
    for arr in mids + [w_out, b_out]:
        in_specs.append(pl.BlockSpec(arr.shape, lambda i: (0, 0)))
    # Output block's last dim equals the full array dim (legal); no 128-pad.
    out_spec = pl.BlockSpec((tile_b, out_dim), lambda i: (i, 0))

    itemsz = jnp.dtype(compute_dtype).itemsize
    flops = 2 * B_p * (k_tot * hidden_p
                       + num_mid * hidden_p * hidden_p
                       + hidden_p * out_p)
    transcendentals = B_p * hidden_p * num_act
    bytes_accessed = (X_p.size * 4
                      + fused.size * itemsz
                      + sum(int(a.size) * a.dtype.itemsize
                            for a in mids + [b0, w_out, b_out])
                      + B_p * out_dim * 4)

    out = pl.pallas_call(
        functools.partial(_fused_mlp_kernel, num_inputs, num_mid),
        out_shape=jax.ShapeDtypeStruct((B_p, out_dim), jnp.float32),
        grid=(B_p // tile_b,),
        in_specs=in_specs,
        out_specs=out_spec,
        compiler_params=pltpu.CompilerParams(
            dimension_semantics=("parallel",)),
        cost_estimate=pl.CostEstimate(flops=int(flops),
                                      transcendentals=int(transcendentals),
                                      bytes_accessed=int(bytes_accessed)),
    )(*inputs)

    return out[:B, :]


def _reference_forward(X_idx, emb_table, weights, biases):
    B = X_idx.shape[0]
    x = jnp.take(emb_table, X_idx, axis=0).reshape(B, -1)
    h = x
    for w, b in zip(weights[:-1], biases[:-1]):
        h = jnp.tanh(h @ w + b)
    return h @ weights[-1] + biases[-1]


if __name__ == "__main__":
    # Small shapes consistent with the module defaults.
    vocab_size = 100
    num_inputs = 4
    embed_dim = 40
    hidden_dim = 50
    output_size = 3
    num_layers = 2          # -> 2 ActivationLayers + final Linear

    key = jax.random.PRNGKey(0)
    keys = jax.random.split(key, 8)

    emb_table = jax.random.normal(keys[0], (vocab_size, embed_dim), jnp.float32) * 0.1

    input_size = num_inputs * embed_dim
    dims = [input_size] + [hidden_dim] * num_layers + [output_size]
    weights, biases = [], []
    for li, (d_in, d_out) in enumerate(zip(dims[:-1], dims[1:])):
        wk, bk = jax.random.split(keys[1 + li])
        # (in, out) layout == transpose of torch nn.Linear's weight.
        weights.append(jax.random.normal(wk, (d_in, d_out), jnp.float32) * 0.05)
        biases.append(jax.random.normal(bk, (d_out,), jnp.float32) * 0.05)

    # batch=37 exercises the single-step padded path; batch=300 exercises a
    # multi-step grid (tile_b=256, 2 steps) so both TensorCores get work on v7x.
    for batch in (37, 300):
        X_idx = jax.random.randint(keys[7], (batch, num_inputs), 0, vocab_size,
                                   jnp.int32)
        out = deep_neural_embedding_forward(X_idx, emb_table, weights, biases)
        out = jax.block_until_ready(out)
        ref = _reference_forward(X_idx, emb_table, weights, biases)
        assert out.shape == (batch, output_size)
        # bf16 matmul operands => relaxed tolerance vs the f32 reference.
        assert jnp.allclose(out, ref, atol=5e-3, rtol=5e-2), \
            f"mismatch vs reference at batch={batch}"

    print("KERNEL_OK")
</pallas_src>

<mosaic_0001>
module attributes {stable_mosaic.version = 11 : i64} {
  func.func @_fused_mlp_kernel(%arg0: i32, %arg1: memref<128x4xi32, #tpu.memory_space<vmem>>, %arg2: memref<512x128xbf16, #tpu.memory_space<vmem>>, %arg3: memref<1x128xf32, #tpu.memory_space<vmem>>, %arg4: memref<128x128xbf16, #tpu.memory_space<vmem>>, %arg5: memref<1x128xf32, #tpu.memory_space<vmem>>, %arg6: memref<128x128xbf16, #tpu.memory_space<vmem>>, %arg7: memref<1x128xf32, #tpu.memory_space<vmem>>, %arg8: memref<128x3xf32, #tpu.memory_space<vmem>>) attributes {dimension_semantics = [#tpu.dimension_semantics<parallel>], iteration_bounds = array<i64: 1>, scalar_prefetch = 0 : i64, scratch_operands = 0 : i64, tpu.core_type = #tpu.core_type<tc>, window_params = [{transform_indices = @transform_0, window_bounds = array<i64: 128, 4>}, {pipeline_mode = #tpu.pipeline_mode<synchronous>, transform_indices = @transform_1, window_bounds = array<i64: 512, 128>}, {pipeline_mode = #tpu.pipeline_mode<synchronous>, transform_indices = @transform_2, window_bounds = array<i64: 1, 128>}, {pipeline_mode = #tpu.pipeline_mode<synchronous>, transform_indices = @transform_3, window_bounds = array<i64: 128, 128>}, {pipeline_mode = #tpu.pipeline_mode<synchronous>, transform_indices = @transform_4, window_bounds = array<i64: 1, 128>}, {pipeline_mode = #tpu.pipeline_mode<synchronous>, transform_indices = @transform_5, window_bounds = array<i64: 128, 128>}, {pipeline_mode = #tpu.pipeline_mode<synchronous>, transform_indices = @transform_6, window_bounds = array<i64: 1, 128>}, {transform_indices = @transform_7, window_bounds = array<i64: 128, 3>}]} {
    %c0 = arith.constant 0 : index
    %c0_0 = arith.constant 0 : index
    %0 = vector.load %arg1[%c0, %c0_0] : memref<128x4xi32, #tpu.memory_space<vmem>>, vector<128x4xi32>
    %1 = tpu.iota {dimensions = array<i32: 1>} : vector<128x512xi32>
    %2 = vector.extract_strided_slice %0 {offsets = [0, 0], sizes = [128, 1], strides = [1, 1]} : vector<128x4xi32> to vector<128x1xi32>
    %3 = vector.broadcast %2 : vector<128x1xi32> to vector<128x512xi32>
    %4 = arith.cmpi eq, %3, %1 : vector<128x512xi32>
    %5 = vector.extract_strided_slice %0 {offsets = [0, 1], sizes = [128, 1], strides = [1, 1]} : vector<128x4xi32> to vector<128x1xi32>
    %6 = vector.broadcast %5 : vector<128x1xi32> to vector<128x512xi32>
    %7 = arith.cmpi eq, %6, %1 : vector<128x512xi32>
    %8 = arith.ori %4, %7 : vector<128x512xi1>
    %9 = vector.extract_strided_slice %0 {offsets = [0, 2], sizes = [128, 1], strides = [1, 1]} : vector<128x4xi32> to vector<128x1xi32>
    %10 = vector.broadcast %9 : vector<128x1xi32> to vector<128x512xi32>
    %11 = arith.cmpi eq, %10, %1 : vector<128x512xi32>
    %12 = arith.ori %8, %11 : vector<128x512xi1>
    %13 = vector.extract_strided_slice %0 {offsets = [0, 3], sizes = [128, 1], strides = [1, 1]} : vector<128x4xi32> to vector<128x1xi32>
    %14 = vector.broadcast %13 : vector<128x1xi32> to vector<128x512xi32>
    %15 = arith.cmpi eq, %14, %1 : vector<128x512xi32>
    %16 = arith.ori %12, %15 : vector<128x512xi1>
    %17 = arith.extui %16 : vector<128x512xi1> to vector<128x512xi32>
    %18 = arith.sitofp %17 : vector<128x512xi32> to vector<128x512xf32>
    %19 = arith.truncf %18 : vector<128x512xf32> to vector<128x512xbf16>
    %c0_1 = arith.constant 0 : index
    %c0_2 = arith.constant 0 : index
    %20 = vector.load %arg2[%c0_1, %c0_2] : memref<512x128xbf16, #tpu.memory_space<vmem>>, vector<512x128xbf16>
    %cst = arith.constant dense<0.000000e+00> : vector<128x128xf32>
    %21 = tpu.matmul %19, %20, %cst {dimension_numbers = #tpu.dot_dimension_numbers<[1], [0], [0], [1], [0, 0, 1, 1], [], []>} : vector<128x512xbf16>, vector<512x128xbf16>, vector<128x128xf32> -> vector<128x128xf32>
    %c0_3 = arith.constant 0 : index
    %c0_4 = arith.constant 0 : index
    %22 = vector.load %arg3[%c0_3, %c0_4] : memref<1x128xf32, #tpu.memory_space<vmem>>, vector<1x128xf32>
    %23 = vector.broadcast %22 : vector<1x128xf32> to vector<128x128xf32>
    %24 = arith.addf %21, %23 : vector<128x128xf32>
    %25 = math.tanh %24 : vector<128x128xf32>
    %c0_5 = arith.constant 0 : index
    %c0_6 = arith.constant 0 : index
    %26 = vector.load %arg4[%c0_5, %c0_6] : memref<128x128xbf16, #tpu.memory_space<vmem>>, vector<128x128xbf16>
    %c0_7 = arith.constant 0 : index
    %c0_8 = arith.constant 0 : index
    %27 = vector.load %arg5[%c0_7, %c0_8] : memref<1x128xf32, #tpu.memory_space<vmem>>, vector<1x128xf32>
    %28 = arith.truncf %25 : vector<128x128xf32> to vector<128x128xbf16>
    %cst_9 = arith.constant dense<0.000000e+00> : vector<128x128xf32>
    %29 = tpu.matmul %28, %26, %cst_9 {dimension_numbers = #tpu.dot_dimension_numbers<[1], [0], [0], [1], [0, 0, 1, 1], [], []>} : vector<128x128xbf16>, vector<128x128xbf16>, vector<128x128xf32> -> vector<128x128xf32>
    %30 = vector.broadcast %27 : vector<1x128xf32> to vector<128x128xf32>
    %31 = arith.addf %29, %30 : vector<128x128xf32>
    %32 = math.tanh %31 : vector<128x128xf32>
    %c0_10 = arith.constant 0 : index
    %c0_11 = arith.constant 0 : index
    %33 = vector.load %arg6[%c0_10, %c0_11] : memref<128x128xbf16, #tpu.memory_space<vmem>>, vector<128x128xbf16>
    %c0_12 = arith.constant 0 : index
    %c0_13 = arith.constant 0 : index
    %34 = vector.load %arg7[%c0_12, %c0_13] : memref<1x128xf32, #tpu.memory_space<vmem>>, vector<1x128xf32>
    %35 = arith.truncf %32 : vector<128x128xf32> to vector<128x128xbf16>
    %cst_14 = arith.constant dense<0.000000e+00> : vector<128x128xf32>
    %36 = tpu.matmul %35, %33, %cst_14 {dimension_numbers = #tpu.dot_dimension_numbers<[1], [0], [0], [1], [0, 0, 1, 1], [], []>} : vector<128x128xbf16>, vector<128x128xbf16>, vector<128x128xf32> -> vector<128x128xf32>
    %37 = vector.broadcast %34 : vector<1x128xf32> to vector<128x128xf32>
    %38 = arith.addf %36, %37 : vector<128x128xf32>
    %39 = vector.extract_strided_slice %38 {offsets = [0, 0], sizes = [128, 3], strides = [1, 1]} : vector<128x128xf32> to vector<128x3xf32>
    %c0_15 = arith.constant 0 : index
    %c0_16 = arith.constant 0 : index
    %40 = vector.load %arg8[%c0_15, %c0_16] : memref<128x3xf32, #tpu.memory_space<vmem>>, vector<128x3xf32>
    tpu.vector_store %arg8[%c0_15, %c0_16], %39 {strides = array<i32>} : memref<128x3xf32, #tpu.memory_space<vmem>>, vector<128x3xf32>,
    return
  }
  func.func @transform_0(%arg0: i32) -> (i32, i32) {
    %c0_i32 = arith.constant 0 : i32
    %c0_i32_0 = arith.constant 0 : i32
    return %arg0, %c0_i32 : i32, i32
  }
  func.func @transform_1(%arg0: i32) -> (i32, i32) {
    %c0_i32 = arith.constant 0 : i32
    %c0_i32_0 = arith.constant 0 : i32
    %c0_i32_1 = arith.constant 0 : i32
    return %c0_i32, %c0_i32_0 : i32, i32
  }
  func.func @transform_2(%arg0: i32) -> (i32, i32) {
    %c0_i32 = arith.constant 0 : i32
    %c0_i32_0 = arith.constant 0 : i32
    %c0_i32_1 = arith.constant 0 : i32
    return %c0_i32, %c0_i32_0 : i32, i32
  }
  func.func @transform_3(%arg0: i32) -> (i32, i32) {
    %c0_i32 = arith.constant 0 : i32
    %c0_i32_0 = arith.constant 0 : i32
    %c0_i32_1 = arith.constant 0 : i32
    return %c0_i32, %c0_i32_0 : i32, i32
  }
  func.func @transform_4(%arg0: i32) -> (i32, i32) {
    %c0_i32 = arith.constant 0 : i32
    %c0_i32_0 = arith.constant 0 : i32
    %c0_i32_1 = arith.constant 0 : i32
    return %c0_i32, %c0_i32_0 : i32, i32
  }
  func.func @transform_5(%arg0: i32) -> (i32, i32) {
    %c0_i32 = arith.constant 0 : i32
    %c0_i32_0 = arith.constant 0 : i32
    %c0_i32_1 = arith.constant 0 : i32
    return %c0_i32, %c0_i32_0 : i32, i32
  }
  func.func @transform_6(%arg0: i32) -> (i32, i32) {
    %c0_i32 = arith.constant 0 : i32
    %c0_i32_0 = arith.constant 0 : i32
    %c0_i32_1 = arith.constant 0 : i32
    return %c0_i32, %c0_i32_0 : i32, i32
  }
  func.func @transform_7(%arg0: i32) -> (i32, i32) {
    %c0_i32 = arith.constant 0 : i32
    %c0_i32_0 = arith.constant 0 : i32
    return %arg0, %c0_i32 : i32, i32
  }
}

</mosaic_0001>

<llo_original>
// kernel: tpu_custom_call.1
$region0: #{tpu_custom_call.1}
  #allocation0 [shape = 'u32[]', space=smem, size = 0x4, offset = 0x4, fixed_abs, tag = 'smem constant byte address 0x4 - core index']
  #allocation1 [shape = 'u32[144,128]{1,0:T(1,128)}', space=vmem, size = 0x12000, scoped, tag = 'internal scratch']
  %s0 = inlined_call_operand.vmem [shape: s32[128,4], index: 0, kind: input, shape index: {}]
  %s1 = inlined_call_operand.hbm [shape: bf16[512,128], index: 1, kind: input, shape index: {}]
  %s2 = inlined_call_operand.vmem [shape: f32[1,128], index: 2, kind: input, shape index: {}]
  %s3 = inlined_call_operand.vmem [shape: bf16[128,128], index: 3, kind: input, shape index: {}]
  %s4 = inlined_call_operand.vmem [shape: f32[1,128], index: 4, kind: input, shape index: {}]
  %s5 = inlined_call_operand.vmem [shape: bf16[128,128], index: 5, kind: input, shape index: {}]
  %s6 = inlined_call_operand.vmem [shape: f32[1,128], index: 6, kind: input, shape index: {}]
  %s7 = inlined_call_operand.vmem [shape: f32[128,3], index: 7, kind: output, shape index: {}]
  %s8 = sld [smem:[#allocation0]]
  $region42: #{tpu_custom_call.1} parent=0
    _
  %s10 = ssub.s32 1, %s8
  %s11 = scalar_select 0, %s10, %s8
  $region1: #{tpu_custom_call.1} parent=0
    #allocation2 [shape = 'u8[131072]{0}', space=vmem, size = 0x20000, scoped, tag = 'input window, operand 1, single buffered']
    #allocation3 [shape = 's32[1]{0}', space=sflag, size = 0x4, scoped, tag = 'scoped memory for tpu_custom_call.1']
    %12 = vsyncpa [#allocation3], 0
    // Predicated region
    $region2: #{tpu_custom_call.1} parent=1 // pred_check
      _
    $region3: #{tpu_custom_call.1} parent=1 // pred_check_branch
      %14 = sbr.rel (0) target = $region5
    $region4: #{tpu_custom_call.1} parent=1 // pred_region
      _
    $region5: #{tpu_custom_call.1} parent=1 // pred_fallthru
      _
    // Predicated region
    $region6: #{tpu_custom_call.1} parent=1 // pred_check
      _
    $region7: #{tpu_custom_call.1} parent=1 // pred_check_branch
      %16 = sbr.rel (0) target = $region9
    $region8: #{tpu_custom_call.1} parent=1 // pred_region
      %s18 = ssub.s32 4096, 4096
      %19 = vsyncadd [#allocation3], %s18
      %s20 = sshll.u32 [#allocation2], 4
      %s21 = int_to_ptr.vmem [resolvable:$true] %s20
      %26 = dma.hbm_to_vmem [thread:$0]  %s1, 4096, %s21, [#allocation3], 64, 64, 4
    $region9: #{tpu_custom_call.1} parent=1 // pred_fallthru
      _
    // Predicated region
    $region10: #{tpu_custom_call.1} parent=1 // pred_check
      _
    $region11: #{tpu_custom_call.1} parent=1 // pred_check_branch
      %28 = sbr.rel (0) target = $region13
    $region12: #{tpu_custom_call.1} parent=1 // pred_region
      _
    $region13: #{tpu_custom_call.1} parent=1 // pred_fallthru
      _
    // Predicated region
    $region14: #{tpu_custom_call.1} parent=1 // pred_check
      _
    $region15: #{tpu_custom_call.1} parent=1 // pred_check_branch
      %30 = sbr.rel (0) target = $region17
    $region16: #{tpu_custom_call.1} parent=1 // pred_region
      _
    $region17: #{tpu_custom_call.1} parent=1 // pred_fallthru
      _
    // Predicated region
    $region18: #{tpu_custom_call.1} parent=1 // pred_check
      _
    $region19: #{tpu_custom_call.1} parent=1 // pred_check_branch
      %32 = sbr.rel (0) target = $region21
    $region20: #{tpu_custom_call.1} parent=1 // pred_region
      _
    $region21: #{tpu_custom_call.1} parent=1 // pred_fallthru
      _
    // Predicated region
    $region22: #{tpu_custom_call.1} parent=1 // pred_check
      _
    $region23: #{tpu_custom_call.1} parent=1 // pred_check_branch
      %34 = sbr.rel (0) target = $region25
    $region24: #{tpu_custom_call.1} parent=1 // pred_region
      _
    $region25: #{tpu_custom_call.1} parent=1 // pred_fallthru
      _
    // Predicated region
    $region26: #{tpu_custom_call.1} parent=1 // pred_check
      _
    $region27: #{tpu_custom_call.1} parent=1 // pred_check_branch
      %36 = sbr.rel (0) target = $region29
    $region28: #{tpu_custom_call.1} parent=1 // pred_region
      _
    $region29: #{tpu_custom_call.1} parent=1 // pred_fallthru
      _
    // Predicated region
    $region30: #{tpu_custom_call.1} parent=1 // pred_check
      _
    $region31: #{tpu_custom_call.1} parent=1 // pred_check_branch
      %38 = sbr.rel (0) target = $region33
    $region32: #{tpu_custom_call.1} parent=1 // pred_region
      %39 = dma.done [#allocation3], 4096
    $region33: #{tpu_custom_call.1} parent=1 // pred_fallthru
      _
    %v41 = vld [vmem:[%s0] sm:$0xff]
    %v42 = vld [vmem:[%s0 + $0x8] sm:$0xff]
    %v43 = vld [vmem:[%s0 + $0x10] sm:$0xff]
    %v44 = vld [vmem:[%s0 + $0x18] sm:$0xff]
    %v45 = vld [vmem:[%s0 + $0x20] sm:$0xff]
    %v46 = vld [vmem:[%s0 + $0x28] sm:$0xff]
    %v47 = vld [vmem:[%s0 + $0x30] sm:$0xff]
    %v48 = vld [vmem:[%s0 + $0x38] sm:$0xff]
    %v49 = vld [vmem:[%s0 + $0x40] sm:$0xff]
    %v50 = vld [vmem:[%s0 + $0x48] sm:$0xff]
    %v51 = vld [vmem:[%s0 + $0x50] sm:$0xff]
    %v52 = vld [vmem:[%s0 + $0x58] sm:$0xff]
    %v53 = vld [vmem:[%s0 + $0x60] sm:$0xff]
    %v54 = vld [vmem:[%s0 + $0x68] sm:$0xff]
    %v55 = vld [vmem:[%s0 + $0x70] sm:$0xff]
    %v56 = vld [vmem:[%s0 + $0x78] sm:$0xff]
    %v57 = vlaneseq
    %v58 = vand.u32 %v57, 127
    %v59 = vadd.s32 %v58, 128
    %v60 = vadd.s32 %v58, 256
    %v61 = vadd.s32 %v58, 384
    %62 = vset.pattern.permute.xlu0 0
    %63 = vperm.xlu0 %62, %v41
    %v64 = vpop.permute.xlu0 %63
    %65 = vset.pattern.permute.xlu0 0
    %66 = vperm.xlu0 %65, %v42
    %v67 = vpop.permute.xlu0 %66
    %68 = vset.pattern.permute.xlu0 0
    %69 = vperm.xlu0 %68, %v43
    %v70 = vpop.permute.xlu0 %69
    %71 = vset.pattern.permute.xlu0 0
    %72 = vperm.xlu0 %71, %v44
    %v73 = vpop.permute.xlu0 %72
    %74 = vset.pattern.permute.xlu0 0
    %75 = vperm.xlu0 %74, %v45
    %v76 = vpop.permute.xlu0 %75
    %77 = vset.pattern.permute.xlu0 0
    %78 = vperm.xlu0 %77, %v46
    %v79 = vpop.permute.xlu0 %78
    %80 = vset.pattern.permute.xlu0 0
    %81 = vperm.xlu0 %80, %v47
    %v82 = vpop.permute.xlu0 %81
    %83 = vset.pattern.permute.xlu0 0
    %84 = vperm.xlu0 %83, %v48
    %v85 = vpop.permute.xlu0 %84
    %86 = vset.pattern.permute.xlu0 0
    %87 = vperm.xlu0 %86, %v49
    %v88 = vpop.permute.xlu0 %87
    %89 = vset.pattern.permute.xlu0 0
    %90 = vperm.xlu0 %89, %v50
    %v91 = vpop.permute.xlu0 %90
    %92 = vset.pattern.permute.xlu0 0
    %93 = vperm.xlu0 %92, %v51
    %v94 = vpop.permute.xlu0 %93
    %95 = vset.pattern.permute.xlu0 0
    %96 = vperm.xlu0 %95, %v52
    %v97 = vpop.permute.xlu0 %96
    %98 = vset.pattern.permute.xlu0 0
    %99 = vperm.xlu0 %98, %v53
    %v100 = vpop.permute.xlu0 %99
    %101 = vset.pattern.permute.xlu0 0
    %102 = vperm.xlu0 %101, %v54
    %v103 = vpop.permute.xlu0 %102
    %104 = vset.pattern.permute.xlu0 0
    %105 = vperm.xlu0 %104, %v55
    %v106 = vpop.permute.xlu0 %105
    %107 = vset.pattern.permute.xlu0 0
    %108 = vperm.xlu0 %107, %v56
    %v109 = vpop.permute.xlu0 %108
    %vm110 = vcmp.eq.s32.totalorder %v64, %v58
    %vm111 = vcmp.eq.s32.totalorder %v64, %v59
    %vm112 = vcmp.eq.s32.totalorder %v64, %v60
    %vm113 = vcmp.eq.s32.totalorder %v64, %v61
    %vm114 = vcmp.eq.s32.totalorder %v67, %v58
    %vm115 = vcmp.eq.s32.totalorder %v67, %v59
    %vm116 = vcmp.eq.s32.totalorder %v67, %v60
    %vm117 = vcmp.eq.s32.totalorder %v67, %v61
    %vm118 = vcmp.eq.s32.totalorder %v70, %v58
    %vm119 = vcmp.eq.s32.totalorder %v70, %v59
    %vm120 = vcmp.eq.s32.totalorder %v70, %v60
    %vm121 = vcmp.eq.s32.totalorder %v70, %v61
    %vm122 = vcmp.eq.s32.totalorder %v73, %v58
    %vm123 = vcmp.eq.s32.totalorder %v73, %v59
    %vm124 = vcmp.eq.s32.totalorder %v73, %v60
    %vm125 = vcmp.eq.s32.totalorder %v73, %v61
    %vm126 = vcmp.eq.s32.totalorder %v76, %v58
    %vm127 = vcmp.eq.s32.totalorder %v76, %v59
    %vm128 = vcmp.eq.s32.totalorder %v76, %v60
    %vm129 = vcmp.eq.s32.totalorder %v76, %v61
    %vm130 = vcmp.eq.s32.totalorder %v79, %v58
    %vm131 = vcmp.eq.s32.totalorder %v79, %v59
    %vm132 = vcmp.eq.s32.totalorder %v79, %v60
    %vm133 = vcmp.eq.s32.totalorder %v79, %v61
    %vm134 = vcmp.eq.s32.totalorder %v82, %v58
    %vm135 = vcmp.eq.s32.totalorder %v82, %v59
    %vm136 = vcmp.eq.s32.totalorder %v82, %v60
    %vm137 = vcmp.eq.s32.totalorder %v82, %v61
    %vm138 = vcmp.eq.s32.totalorder %v85, %v58
    %vm139 = vcmp.eq.s32.totalorder %v85, %v59
    %vm140 = vcmp.eq.s32.totalorder %v85, %v60
    %vm141 = vcmp.eq.s32.totalorder %v85, %v61
    %vm142 = vcmp.eq.s32.totalorder %v88, %v58
    %vm143 = vcmp.eq.s32.totalorder %v88, %v59
    %vm144 = vcmp.eq.s32.totalorder %v88, %v60
    %vm145 = vcmp.eq.s32.totalorder %v88, %v61
    %vm146 = vcmp.eq.s32.totalorder %v91, %v58
    %vm147 = vcmp.eq.s32.totalorder %v91, %v59
    %vm148 = vcmp.eq.s32.totalorder %v91, %v60
    %vm149 = vcmp.eq.s32.totalorder %v91, %v61
    %vm150 = vcmp.eq.s32.totalorder %v94, %v58
    %vm151 = vcmp.eq.s32.totalorder %v94, %v59
    %vm152 = vcmp.eq.s32.totalorder %v94, %v60
    %vm153 = vcmp.eq.s32.totalorder %v94, %v61
    %vm154 = vcmp.eq.s32.totalorder %v97, %v58
    %vm155 = vcmp.eq.s32.totalorder %v97, %v59
    %vm156 = vcmp.eq.s32.totalorder %v97, %v60
    %vm157 = vcmp.eq.s32.totalorder %v97, %v61
    %vm158 = vcmp.eq.s32.totalorder %v100, %v58
    %vm159 = vcmp.eq.s32.totalorder %v100, %v59
    %vm160 = vcmp.eq.s32.totalorder %v100, %v60
    %vm161 = vcmp.eq.s32.totalorder %v100, %v61
    %vm162 = vcmp.eq.s32.totalorder %v103, %v58
    %vm163 = vcmp.eq.s32.totalorder %v103, %v59
    %vm164 = vcmp.eq.s32.totalorder %v103, %v60
    %vm165 = vcmp.eq.s32.totalorder %v103, %v61
    %vm166 = vcmp.eq.s32.totalorder %v106, %v58
    %vm167 = vcmp.eq.s32.totalorder %v106, %v59
    %vm168 = vcmp.eq.s32.totalorder %v106, %v60
    %vm169 = vcmp.eq.s32.totalorder %v106, %v61
    %vm170 = vcmp.eq.s32.totalorder %v109, %v58
    %vm171 = vcmp.eq.s32.totalorder %v109, %v59
    %vm172 = vcmp.eq.s32.totalorder %v109, %v60
    %vm173 = vcmp.eq.s32.totalorder %v109, %v61
    %174 = vset.pattern.permute.xlu0 1
    %175 = vperm.xlu0 %174, %v41
    %v176 = vpop.permute.xlu0 %175
    %177 = vset.pattern.permute.xlu0 1
    %178 = vperm.xlu0 %177, %v42
    %v179 = vpop.permute.xlu0 %178
    %180 = vset.pattern.permute.xlu0 1
    %181 = vperm.xlu0 %180, %v43
    %v182 = vpop.permute.xlu0 %181
    %183 = vset.pattern.permute.xlu0 1
    %184 = vperm.xlu0 %183, %v44
    %v185 = vpop.permute.xlu0 %184
    %186 = vset.pattern.permute.xlu0 1
    %187 = vperm.xlu0 %186, %v45
    %v188 = vpop.permute.xlu0 %187
    %189 = vset.pattern.permute.xlu0 1
    %190 = vperm.xlu0 %189, %v46
    %v191 = vpop.permute.xlu0 %190
    %192 = vset.pattern.permute.xlu0 1
    %193 = vperm.xlu0 %192, %v47
    %v194 = vpop.permute.xlu0 %193
    %195 = vset.pattern.permute.xlu0 1
    %196 = vperm.xlu0 %195, %v48
    %v197 = vpop.permute.xlu0 %196
    %198 = vset.pattern.permute.xlu0 1
    %199 = vperm.xlu0 %198, %v49
    %v200 = vpop.permute.xlu0 %199
    %201 = vset.pattern.permute.xlu0 1
    %202 = vperm.xlu0 %201, %v50
    %v203 = vpop.permute.xlu0 %202
    %204 = vset.pattern.permute.xlu0 1
    %205 = vperm.xlu0 %204, %v51
    %v206 = vpop.permute.xlu0 %205
    %207 = vset.pattern.permute.xlu0 1
    %208 = vperm.xlu0 %207, %v52
    %v209 = vpop.permute.xlu0 %208
    %210 = vset.pattern.permute.xlu0 1
    %211 = vperm.xlu0 %210, %v53
    %v212 = vpop.permute.xlu0 %211
    %213 = vset.pattern.permute.xlu0 1
    %214 = vperm.xlu0 %213, %v54
    %v215 = vpop.permute.xlu0 %214
    %216 = vset.pattern.permute.xlu0 1
    %217 = vperm.xlu0 %216, %v55
    %v218 = vpop.permute.xlu0 %217
    %219 = vset.pattern.permute.xlu0 1
    %220 = vperm.xlu0 %219, %v56
    %v221 = vpop.permute.xlu0 %220
    %vm222 = vcmp.eq.s32.totalorder %v176, %v58
    %vm223 = vcmp.eq.s32.totalorder %v176, %v59
    %vm224 = vcmp.eq.s32.totalorder %v176, %v60
    %vm225 = vcmp.eq.s32.totalorder %v176, %v61
    %vm226 = vcmp.eq.s32.totalorder %v179, %v58
    %vm227 = vcmp.eq.s32.totalorder %v179, %v59
    %vm228 = vcmp.eq.s32.totalorder %v179, %v60
    %vm229 = vcmp.eq.s32.totalorder %v179, %v61
    %vm230 = vcmp.eq.s32.totalorder %v182, %v58
    %vm231 = vcmp.eq.s32.totalorder %v182, %v59
    %vm232 = vcmp.eq.s32.totalorder %v182, %v60
    %vm233 = vcmp.eq.s32.totalorder %v182, %v61
    %vm234 = vcmp.eq.s32.totalorder %v185, %v58
    %vm235 = vcmp.eq.s32.totalorder %v185, %v59
    %vm236 = vcmp.eq.s32.totalorder %v185, %v60
    %vm237 = vcmp.eq.s32.totalorder %v185, %v61
    %vm238 = vcmp.eq.s32.totalorder %v188, %v58
    %vm239 = vcmp.eq.s32.totalorder %v188, %v59
    %vm240 = vcmp.eq.s32.totalorder %v188, %v60
    %vm241 = vcmp.eq.s32.totalorder %v188, %v61
    %vm242 = vcmp.eq.s32.totalorder %v191, %v58
    %vm243 = vcmp.eq.s32.totalorder %v191, %v59
    %vm244 = vcmp.eq.s32.totalorder %v191, %v60
    %vm245 = vcmp.eq.s32.totalorder %v191, %v61
    %vm246 = vcmp.eq.s32.totalorder %v194, %v58
    %vm247 = vcmp.eq.s32.totalorder %v194, %v59
    %vm248 = vcmp.eq.s32.totalorder %v194, %v60
    %vm249 = vcmp.eq.s32.totalorder %v194, %v61
    %vm250 = vcmp.eq.s32.totalorder %v197, %v58
    %vm251 = vcmp.eq.s32.totalorder %v197, %v59
    %vm252 = vcmp.eq.s32.totalorder %v197, %v60
    %vm253 = vcmp.eq.s32.totalorder %v197, %v61
    %vm254 = vcmp.eq.s32.totalorder %v200, %v58
    %vm255 = vcmp.eq.s32.totalorder %v200, %v59
    %vm256 = vcmp.eq.s32.totalorder %v200, %v60
    %vm257 = vcmp.eq.s32.totalorder %v200, %v61
    %vm258 = vcmp.eq.s32.totalorder %v203, %v58
    %vm259 = vcmp.eq.s32.totalorder %v203, %v59
    %vm260 = vcmp.eq.s32.totalorder %v203, %v60
    %vm261 = vcmp.eq.s32.totalorder %v203, %v61
    %vm262 = vcmp.eq.s32.totalorder %v206, %v58
    %vm263 = vcmp.eq.s32.totalorder %v206, %v59
    %vm264 = vcmp.eq.s32.totalorder %v206, %v60
    %vm265 = vcmp.eq.s32.totalorder %v206, %v61
    %vm266 = vcmp.eq.s32.totalorder %v209, %v58
    %vm267 = vcmp.eq.s32.totalorder %v209, %v59
    %vm268 = vcmp.eq.s32.totalorder %v209, %v60
    %vm269 = vcmp.eq.s32.totalorder %v209, %v61
    %vm270 = vcmp.eq.s32.totalorder %v212, %v58
    %vm271 = vcmp.eq.s32.totalorder %v212, %v59
    %vm272 = vcmp.eq.s32.totalorder %v212, %v60
    %vm273 = vcmp.eq.s32.totalorder %v212, %v61
    %vm274 = vcmp.eq.s32.totalorder %v215, %v58
    %vm275 = vcmp.eq.s32.totalorder %v215, %v59
    %vm276 = vcmp.eq.s32.totalorder %v215, %v60
    %vm277 = vcmp.eq.s32.totalorder %v215, %v61
    %vm278 = vcmp.eq.s32.totalorder %v218, %v58
    %vm279 = vcmp.eq.s32.totalorder %v218, %v59
    %vm280 = vcmp.eq.s32.totalorder %v218, %v60
    %vm281 = vcmp.eq.s32.totalorder %v218, %v61
    %vm282 = vcmp.eq.s32.totalorder %v221, %v58
    %vm283 = vcmp.eq.s32.totalorder %v221, %v59
    %vm284 = vcmp.eq.s32.totalorder %v221, %v60
    %vm285 = vcmp.eq.s32.totalorder %v221, %v61
    %vm286 = vmor %vm110, %vm222
    %vm287 = vmor %vm111, %vm223
    %vm288 = vmor %vm112, %vm224
    %vm289 = vmor %vm113, %vm225
    %vm290 = vmor %vm114, %vm226
    %vm291 = vmor %vm115, %vm227
    %vm292 = vmor %vm116, %vm228
    %vm293 = vmor %vm117, %vm229
    %vm294 = vmor %vm118, %vm230
    %vm295 = vmor %vm119, %vm231
    %vm296 = vmor %vm120, %vm232
    %vm297 = vmor %vm121, %vm233
    %vm298 = vmor %vm122, %vm234
    %vm299 = vmor %vm123, %vm235
    %vm300 = vmor %vm124, %vm236
    %vm301 = vmor %vm125, %vm237
    %vm302 = vmor %vm126, %vm238
    %vm303 = vmor %vm127, %vm239
    %vm304 = vmor %vm128, %vm240
    %vm305 = vmor %vm129, %vm241
    %vm306 = vmor %vm130, %vm242
    %vm307 = vmor %vm131, %vm243
    %vm308 = vmor %vm132, %vm244
    %vm309 = vmor %vm133, %vm245
    %vm310 = vmor %vm134, %vm246
    %vm311 = vmor %vm135, %vm247
    %vm312 = vmor %vm136, %vm248
    %vm313 = vmor %vm137, %vm249
    %vm314 = vmor %vm138, %vm250
    %vm315 = vmor %vm139, %vm251
    %vm316 = vmor %vm140, %vm252
    %vm317 = vmor %vm141, %vm253
    %vm318 = vmor %vm142, %vm254
    %vm319 = vmor %vm143, %vm255
    %vm320 = vmor %vm144, %vm256
    %vm321 = vmor %vm145, %vm257
    %vm322 = vmor %vm146, %vm258
    %vm323 = vmor %vm147, %vm259
    %vm324 = vmor %vm148, %vm260
    %vm325 = vmor %vm149, %vm261
    %vm326 = vmor %vm150, %vm262
    %vm327 = vmor %vm151, %vm263
    %vm328 = vmor %vm152, %vm264
    %vm329 = vmor %vm153, %vm265
    %vm330 = vmor %vm154, %vm266
    %vm331 = vmor %vm155, %vm267
    %vm332 = vmor %vm156, %vm268
    %vm333 = vmor %vm157, %vm269
    %vm334 = vmor %vm158, %vm270
    %vm335 = vmor %vm159, %vm271
    %vm336 = vmor %vm160, %vm272
    %vm337 = vmor %vm161, %vm273
    %vm338 = vmor %vm162, %vm274
    %vm339 = vmor %vm163, %vm275
    %vm340 = vmor %vm164, %vm276
    %vm341 = vmor %vm165, %vm277
    %vm342 = vmor %vm166, %vm278
    %vm343 = vmor %vm167, %vm279
    %vm344 = vmor %vm168, %vm280
    %vm345 = vmor %vm169, %vm281
    %vm346 = vmor %vm170, %vm282
    %vm347 = vmor %vm171, %vm283
    %vm348 = vmor %vm172, %vm284
    %vm349 = vmor %vm173, %vm285
    %350 = vset.pattern.permute.xlu0 2
    %351 = vperm.xlu0 %350, %v41
    %v352 = vpop.permute.xlu0 %351
    %353 = vset.pattern.permute.xlu0 2
    %354 = vperm.xlu0 %353, %v42
    %v355 = vpop.permute.xlu0 %354
    %356 = vset.pattern.permute.xlu0 2
    %357 = vperm.xlu0 %356, %v43
    %v358 = vpop.permute.xlu0 %357
    %359 = vset.pattern.permute.xlu0 2
    %360 = vperm.xlu0 %359, %v44
    %v361 = vpop.permute.xlu0 %360
    %362 = vset.pattern.permute.xlu0 2
    %363 = vperm.xlu0 %362, %v45
    %v364 = vpop.permute.xlu0 %363
    %365 = vset.pattern.permute.xlu0 2
    %366 = vperm.xlu0 %365, %v46
    %v367 = vpop.permute.xlu0 %366
    %368 = vset.pattern.permute.xlu0 2
    %369 = vperm.xlu0 %368, %v47
    %v370 = vpop.permute.xlu0 %369
    %371 = vset.pattern.permute.xlu0 2
    %372 = vperm.xlu0 %371, %v48
    %v373 = vpop.permute.xlu0 %372
    %374 = vset.pattern.permute.xlu0 2
    %375 = vperm.xlu0 %374, %v49
    %v376 = vpop.permute.xlu0 %375
    %377 = vset.pattern.permute.xlu0 2
    %378 = vperm.xlu0 %377, %v50
    %v379 = vpop.permute.xlu0 %378
    %380 = vset.pattern.permute.xlu0 2
    %381 = vperm.xlu0 %380, %v51
    %v382 = vpop.permute.xlu0 %381
    %383 = vset.pattern.permute.xlu0 2
    %384 = vperm.xlu0 %383, %v52
    %v385 = vpop.permute.xlu0 %384
    %386 = vset.pattern.permute.xlu0 2
    %387 = vperm.xlu0 %386, %v53
    %v388 = vpop.permute.xlu0 %387
    %389 = vset.pattern.permute.xlu0 2
    %390 = vperm.xlu0 %389, %v54
    %v391 = vpop.permute.xlu0 %390
    %392 = vset.pattern.permute.xlu0 2
    %393 = vperm.xlu0 %392, %v55
    %v394 = vpop.permute.xlu0 %393
    %395 = vset.pattern.permute.xlu0 2
    %396 = vperm.xlu0 %395, %v56
    %v397 = vpop.permute.xlu0 %396
    %vm398 = vcmp.eq.s32.totalorder %v352, %v58
    %vm399 = vcmp.eq.s32.totalorder %v352, %v59
    %vm400 = vcmp.eq.s32.totalorder %v352, %v60
    %vm401 = vcmp.eq.s32.totalorder %v352, %v61
    %vm402 = vcmp.eq.s32.totalorder %v355, %v58
    %vm403 = vcmp.eq.s32.totalorder %v355, %v59
    %vm404 = vcmp.eq.s32.totalorder %v355, %v60
    %vm405 = vcmp.eq.s32.totalorder %v355, %v61
    %vm406 = vcmp.eq.s32.totalorder %v358, %v58
    %vm407 = vcmp.eq.s32.totalorder %v358, %v59
    %vm408 = vcmp.eq.s32.totalorder %v358, %v60
    %vm409 = vcmp.eq.s32.totalorder %v358, %v61
    %vm410 = vcmp.eq.s32.totalorder %v361, %v58
    %vm411 = vcmp.eq.s32.totalorder %v361, %v59
    %vm412 = vcmp.eq.s32.totalorder %v361, %v60
    %vm413 = vcmp.eq.s32.totalorder %v361, %v61
    %vm414 = vcmp.eq.s32.totalorder %v364, %v58
    %vm415 = vcmp.eq.s32.totalorder %v364, %v59
    %vm416 = vcmp.eq.s32.totalorder %v364, %v60
    %vm417 = vcmp.eq.s32.totalorder %v364, %v61
    %vm418 = vcmp.eq.s32.totalorder %v367, %v58
    %vm419 = vcmp.eq.s32.totalorder %v367, %v59
    %vm420 = vcmp.eq.s32.totalorder %v367, %v60
    %vm421 = vcmp.eq.s32.totalorder %v367, %v61
    %vm422 = vcmp.eq.s32.totalorder %v370, %v58
    %vm423 = vcmp.eq.s32.totalorder %v370, %v59
    %vm424 = vcmp.eq.s32.totalorder %v370, %v60
    %vm425 = vcmp.eq.s32.totalorder %v370, %v61
    %vm426 = vcmp.eq.s32.totalorder %v373, %v58
    %vm427 = vcmp.eq.s32.totalorder %v373, %v59
    %vm428 = vcmp.eq.s32.totalorder %v373, %v60
    %vm429 = vcmp.eq.s32.totalorder %v373, %v61
    %vm430 = vcmp.eq.s32.totalorder %v376, %v58
    %vm431 = vcmp.eq.s32.totalorder %v376, %v59
    %vm432 = vcmp.eq.s32.totalorder %v376, %v60
    %vm433 = vcmp.eq.s32.totalorder %v376, %v61
    %vm434 = vcmp.eq.s32.totalorder %v379, %v58
    %vm435 = vcmp.eq.s32.totalorder %v379, %v59
    %vm436 = vcmp.eq.s32.totalorder %v379, %v60
    %vm437 = vcmp.eq.s32.totalorder %v379, %v61
    %vm438 = vcmp.eq.s32.totalorder %v382, %v58
    %vm439 = vcmp.eq.s32.totalorder %v382, %v59
    %vm440 = vcmp.eq.s32.totalorder %v382, %v60
    %vm441 = vcmp.eq.s32.totalorder %v382, %v61
    %vm442 = vcmp.eq.s32.totalorder %v385, %v58
    %vm443 = vcmp.eq.s32.totalorder %v385, %v59
    %vm444 = vcmp.eq.s32.totalorder %v385, %v60
    %vm445 = vcmp.eq.s32.totalorder %v385, %v61
    %vm446 = vcmp.eq.s32.totalorder %v388, %v58
    %vm447 = vcmp.eq.s32.totalorder %v388, %v59
    %vm448 = vcmp.eq.s32.totalorder %v388, %v60
    %vm449 = vcmp.eq.s32.totalorder %v388, %v61
    %vm450 = vcmp.eq.s32.totalorder %v391, %v58
    %vm451 = vcmp.eq.s32.totalorder %v391, %v59
    %vm452 = vcmp.eq.s32.totalorder %v391, %v60
    %vm453 = vcmp.eq.s32.totalorder %v391, %v61
    %vm454 = vcmp.eq.s32.totalorder %v394, %v58
    %vm455 = vcmp.eq.s32.totalorder %v394, %v59
    %vm456 = vcmp.eq.s32.totalorder %v394, %v60
    %vm457 = vcmp.eq.s32.totalorder %v394, %v61
    %vm458 = vcmp.eq.s32.totalorder %v397, %v58
    %vm459 = vcmp.eq.s32.totalorder %v397, %v59
    %vm460 = vcmp.eq.s32.totalorder %v397, %v60
    %vm461 = vcmp.eq.s32.totalorder %v397, %v61
    %vm462 = vmor %vm286, %vm398
    %vm463 = vmor %vm287, %vm399
    %vm464 = vmor %vm288, %vm400
    %vm465 = vmor %vm289, %vm401
    %vm466 = vmor %vm290, %vm402
    %vm467 = vmor %vm291, %vm403
    %vm468 = vmor %vm292, %vm404
    %vm469 = vmor %vm293, %vm405
    %vm470 = vmor %vm294, %vm406
    %vm471 = vmor %vm295, %vm407
    %vm472 = vmor %vm296, %vm408
    %vm473 = vmor %vm297, %vm409
    %vm474 = vmor %vm298, %vm410
    %vm475 = vmor %vm299, %vm411
    %vm476 = vmor %vm300, %vm412
    %vm477 = vmor %vm301, %vm413
    %vm478 = vmor %vm302, %vm414
    %vm479 = vmor %vm303, %vm415
    %vm480 = vmor %vm304, %vm416
    %vm481 = vmor %vm305, %vm417
    %vm482 = vmor %vm306, %vm418
    %vm483 = vmor %vm307, %vm419
    %vm484 = vmor %vm308, %vm420
    %vm485 = vmor %vm309, %vm421
    %vm486 = vmor %vm310, %vm422
    %vm487 = vmor %vm311, %vm423
    %vm488 = vmor %vm312, %vm424
    %vm489 = vmor %vm313, %vm425
    %vm490 = vmor %vm314, %vm426
    %vm491 = vmor %vm315, %vm427
    %vm492 = vmor %vm316, %vm428
    %vm493 = vmor %vm317, %vm429
    %vm494 = vmor %vm318, %vm430
    %vm495 = vmor %vm319, %vm431
    %vm496 = vmor %vm320, %vm432
    %vm497 = vmor %vm321, %vm433
    %vm498 = vmor %vm322, %vm434
    %vm499 = vmor %vm323, %vm435
    %vm500 = vmor %vm324, %vm436
    %vm501 = vmor %vm325, %vm437
    %vm502 = vmor %vm326, %vm438
    %vm503 = vmor %vm327, %vm439
    %vm504 = vmor %vm328, %vm440
    %vm505 = vmor %vm329, %vm441
    %vm506 = vmor %vm330, %vm442
    %vm507 = vmor %vm331, %vm443
    %vm508 = vmor %vm332, %vm444
    %vm509 = vmor %vm333, %vm445
    %vm510 = vmor %vm334, %vm446
    %vm511 = vmor %vm335, %vm447
    %vm512 = vmor %vm336, %vm448
    %vm513 = vmor %vm337, %vm449
    %vm514 = vmor %vm338, %vm450
    %vm515 = vmor %vm339, %vm451
    %vm516 = vmor %vm340, %vm452
    %vm517 = vmor %vm341, %vm453
    %vm518 = vmor %vm342, %vm454
    %vm519 = vmor %vm343, %vm455
    %vm520 = vmor %vm344, %vm456
    %vm521 = vmor %vm345, %vm457
    %vm522 = vmor %vm346, %vm458
    %vm523 = vmor %vm347, %vm459
    %vm524 = vmor %vm348, %vm460
    %vm525 = vmor %vm349, %vm461
    %526 = vset.pattern.permute.xlu0 3
    %527 = vperm.xlu0 %526, %v41
    %v528 = vpop.permute.xlu0 %527
    %529 = vset.pattern.permute.xlu0 3
    %530 = vperm.xlu0 %529, %v42
    %v531 = vpop.permute.xlu0 %530
    %532 = vset.pattern.permute.xlu0 3
    %533 = vperm.xlu0 %532, %v43
    %v534 = vpop.permute.xlu0 %533
    %535 = vset.pattern.permute.xlu0 3
    %536 = vperm.xlu0 %535, %v44
    %v537 = vpop.permute.xlu0 %536
    %538 = vset.pattern.permute.xlu0 3
    %539 = vperm.xlu0 %538, %v45
    %v540 = vpop.permute.xlu0 %539
    %541 = vset.pattern.permute.xlu0 3
    %542 = vperm.xlu0 %541, %v46
    %v543 = vpop.permute.xlu0 %542
    %544 = vset.pattern.permute.xlu0 3
    %545 = vperm.xlu0 %544, %v47
    %v546 = vpop.permute.xlu0 %545
    %547 = vset.pattern.permute.xlu0 3
    %548 = vperm.xlu0 %547, %v48
    %v549 = vpop.permute.xlu0 %548
    %550 = vset.pattern.permute.xlu0 3
    %551 = vperm.xlu0 %550, %v49
    %v552 = vpop.permute.xlu0 %551
    %553 = vset.pattern.permute.xlu0 3
    %554 = vperm.xlu0 %553, %v50
    %v555 = vpop.permute.xlu0 %554
    %556 = vset.pattern.permute.xlu0 3
    %557 = vperm.xlu0 %556, %v51
    %v558 = vpop.permute.xlu0 %557
    %559 = vset.pattern.permute.xlu0 3
    %560 = vperm.xlu0 %559, %v52
    %v561 = vpop.permute.xlu0 %560
    %562 = vset.pattern.permute.xlu0 3
    %563 = vperm.xlu0 %562, %v53
    %v564 = vpop.permute.xlu0 %563
    %565 = vset.pattern.permute.xlu0 3
    %566 = vperm.xlu0 %565, %v54
    %v567 = vpop.permute.xlu0 %566
    %568 = vset.pattern.permute.xlu0 3
    %569 = vperm.xlu0 %568, %v55
    %v570 = vpop.permute.xlu0 %569
    %571 = vset.pattern.permute.xlu0 3
    %572 = vperm.xlu0 %571, %v56
    %v573 = vpop.permute.xlu0 %572
    %vm574 = vcmp.eq.s32.totalorder %v528, %v58
    %vm575 = vcmp.eq.s32.totalorder %v528, %v59
    %vm576 = vcmp.eq.s32.totalorder %v528, %v60
    %vm577 = vcmp.eq.s32.totalorder %v528, %v61
    %vm578 = vcmp.eq.s32.totalorder %v531, %v58
    %vm579 = vcmp.eq.s32.totalorder %v531, %v59
    %vm580 = vcmp.eq.s32.totalorder %v531, %v60
    %vm581 = vcmp.eq.s32.totalorder %v531, %v61
    %vm582 = vcmp.eq.s32.totalorder %v534, %v58
    %vm583 = vcmp.eq.s32.totalorder %v534, %v59
    %vm584 = vcmp.eq.s32.totalorder %v534, %v60
    %vm585 = vcmp.eq.s32.totalorder %v534, %v61
    %vm586 = vcmp.eq.s32.totalorder %v537, %v58
    %vm587 = vcmp.eq.s32.totalorder %v537, %v59
    %vm588 = vcmp.eq.s32.totalorder %v537, %v60
    %vm589 = vcmp.eq.s32.totalorder %v537, %v61
    %vm590 = vcmp.eq.s32.totalorder %v540, %v58
    %vm591 = vcmp.eq.s32.totalorder %v540, %v59
    %vm592 = vcmp.eq.s32.totalorder %v540, %v60
    %vm593 = vcmp.eq.s32.totalorder %v540, %v61
    %vm594 = vcmp.eq.s32.totalorder %v543, %v58
    %vm595 = vcmp.eq.s32.totalorder %v543, %v59
    %vm596 = vcmp.eq.s32.totalorder %v543, %v60
    %vm597 = vcmp.eq.s32.totalorder %v543, %v61
    %vm598 = vcmp.eq.s32.totalorder %v546, %v58
    %vm599 = vcmp.eq.s32.totalorder %v546, %v59
    %vm600 = vcmp.eq.s32.totalorder %v546, %v60
    %vm601 = vcmp.eq.s32.totalorder %v546, %v61
    %vm602 = vcmp.eq.s32.totalorder %v549, %v58
    %vm603 = vcmp.eq.s32.totalorder %v549, %v59
    %vm604 = vcmp.eq.s32.totalorder %v549, %v60
    %vm605 = vcmp.eq.s32.totalorder %v549, %v61
    %vm606 = vcmp.eq.s32.totalorder %v552, %v58
    %vm607 = vcmp.eq.s32.totalorder %v552, %v59
    %vm608 = vcmp.eq.s32.totalorder %v552, %v60
    %vm609 = vcmp.eq.s32.totalorder %v552, %v61
    %vm610 = vcmp.eq.s32.totalorder %v555, %v58
    %vm611 = vcmp.eq.s32.totalorder %v555, %v59
    %vm612 = vcmp.eq.s32.totalorder %v555, %v60
    %vm613 = vcmp.eq.s32.totalorder %v555, %v61
    %vm614 = vcmp.eq.s32.totalorder %v558, %v58
    %vm615 = vcmp.eq.s32.totalorder %v558, %v59
    %vm616 = vcmp.eq.s32.totalorder %v558, %v60
    %vm617 = vcmp.eq.s32.totalorder %v558, %v61
    %vm618 = vcmp.eq.s32.totalorder %v561, %v58
    %vm619 = vcmp.eq.s32.totalorder %v561, %v59
    %vm620 = vcmp.eq.s32.totalorder %v561, %v60
    %vm621 = vcmp.eq.s32.totalorder %v561, %v61
    %vm622 = vcmp.eq.s32.totalorder %v564, %v58
    %vm623 = vcmp.eq.s32.totalorder %v564, %v59
    %vm624 = vcmp.eq.s32.totalorder %v564, %v60
    %vm625 = vcmp.eq.s32.totalorder %v564, %v61
    %vm626 = vcmp.eq.s32.totalorder %v567, %v58
    %vm627 = vcmp.eq.s32.totalorder %v567, %v59
    %vm628 = vcmp.eq.s32.totalorder %v567, %v60
    %vm629 = vcmp.eq.s32.totalorder %v567, %v61
    %vm630 = vcmp.eq.s32.totalorder %v570, %v58
    %vm631 = vcmp.eq.s32.totalorder %v570, %v59
    %vm632 = vcmp.eq.s32.totalorder %v570, %v60
    %vm633 = vcmp.eq.s32.totalorder %v570, %v61
    %vm634 = vcmp.eq.s32.totalorder %v573, %v58
    %vm635 = vcmp.eq.s32.totalorder %v573, %v59
    %vm636 = vcmp.eq.s32.totalorder %v573, %v60
    %vm637 = vcmp.eq.s32.totalorder %v573, %v61
    %vm638 = vmor %vm462, %vm574
    %vm639 = vmor %vm463, %vm575
    %vm640 = vmor %vm464, %vm576
    %vm641 = vmor %vm465, %vm577
    %vm642 = vmor %vm466, %vm578
    %vm643 = vmor %vm467, %vm579
    %vm644 = vmor %vm468, %vm580
    %vm645 = vmor %vm469, %vm581
    %vm646 = vmor %vm470, %vm582
    %vm647 = vmor %vm471, %vm583
    %vm648 = vmor %vm472, %vm584
    %vm649 = vmor %vm473, %vm585
    %vm650 = vmor %vm474, %vm586
    %vm651 = vmor %vm475, %vm587
    %vm652 = vmor %vm476, %vm588
    %vm653 = vmor %vm477, %vm589
    %vm654 = vmor %vm478, %vm590
    %vm655 = vmor %vm479, %vm591
    %vm656 = vmor %vm480, %vm592
    %vm657 = vmor %vm481, %vm593
    %vm658 = vmor %vm482, %vm594
    %vm659 = vmor %vm483, %vm595
    %vm660 = vmor %vm484, %vm596
    %vm661 = vmor %vm485, %vm597
    %vm662 = vmor %vm486, %vm598
    %vm663 = vmor %vm487, %vm599
    %vm664 = vmor %vm488, %vm600
    %vm665 = vmor %vm489, %vm601
    %vm666 = vmor %vm490, %vm602
    %vm667 = vmor %vm491, %vm603
    %vm668 = vmor %vm492, %vm604
    %vm669 = vmor %vm493, %vm605
    %vm670 = vmor %vm494, %vm606
    %vm671 = vmor %vm495, %vm607
    %vm672 = vmor %vm496, %vm608
    %vm673 = vmor %vm497, %vm609
    %vm674 = vmor %vm498, %vm610
    %vm675 = vmor %vm499, %vm611
    %vm676 = vmor %vm500, %vm612
    %vm677 = vmor %vm501, %vm613
    %vm678 = vmor %vm502, %vm614
    %vm679 = vmor %vm503, %vm615
    %vm680 = vmor %vm504, %vm616
    %vm681 = vmor %vm505, %vm617
    %vm682 = vmor %vm506, %vm618
    %vm683 = vmor %vm507, %vm619
    %vm684 = vmor %vm508, %vm620
    %vm685 = vmor %vm509, %vm621
    %vm686 = vmor %vm510, %vm622
    %vm687 = vmor %vm511, %vm623
    %vm688 = vmor %vm512, %vm624
    %vm689 = vmor %vm513, %vm625
    %vm690 = vmor %vm514, %vm626
    %vm691 = vmor %vm515, %vm627
    %vm692 = vmor %vm516, %vm628
    %vm693 = vmor %vm517, %vm629
    %vm694 = vmor %vm518, %vm630
    %vm695 = vmor %vm519, %vm631
    %vm696 = vmor %vm520, %vm632
    %vm697 = vmor %vm521, %vm633
    %vm698 = vmor %vm522, %vm634
    %vm699 = vmor %vm523, %vm635
    %vm700 = vmor %vm524, %vm636
    %vm701 = vmor %vm525, %vm637
    %v702 = vsel %vm638, 1, 0
    %v703 = vsel %vm639, 1, 0
    %v704 = vsel %vm640, 1, 0
    %v705 = vsel %vm641, 1, 0
    %v706 = vsel %vm642, 1, 0
    %v707 = vsel %vm643, 1, 0
    %v708 = vsel %vm644, 1, 0
    %v709 = vsel %vm645, 1, 0
    %v710 = vsel %vm646, 1, 0
    %v711 = vsel %vm647, 1, 0
    %v712 = vsel %vm648, 1, 0
    %v713 = vsel %vm649, 1, 0
    %v714 = vsel %vm650, 1, 0
    %v715 = vsel %vm651, 1, 0
    %v716 = vsel %vm652, 1, 0
    %v717 = vsel %vm653, 1, 0
    %v718 = vsel %vm654, 1, 0
    %v719 = vsel %vm655, 1, 0
    %v720 = vsel %vm656, 1, 0
    %v721 = vsel %vm657, 1, 0
    %v722 = vsel %vm658, 1, 0
    %v723 = vsel %vm659, 1, 0
    %v724 = vsel %vm660, 1, 0
    %v725 = vsel %vm661, 1, 0
    %v726 = vsel %vm662, 1, 0
    %v727 = vsel %vm663, 1, 0
    %v728 = vsel %vm664, 1, 0
    %v729 = vsel %vm665, 1, 0
    %v730 = vsel %vm666, 1, 0
    %v731 = vsel %vm667, 1, 0
    %v732 = vsel %vm668, 1, 0
    %v733 = vsel %vm669, 1, 0
    %v734 = vsel %vm670, 1, 0
    %v735 = vsel %vm671, 1, 0
    %v736 = vsel %vm672, 1, 0
    %v737 = vsel %vm673, 1, 0
    %v738 = vsel %vm674, 1, 0
    %v739 = vsel %vm675, 1, 0
    %v740 = vsel %vm676, 1, 0
    %v741 = vsel %vm677, 1, 0
    %v742 = vsel %vm678, 1, 0
    %v743 = vsel %vm679, 1, 0
    %v744 = vsel %vm680, 1, 0
    %v745 = vsel %vm681, 1, 0
    %v746 = vsel %vm682, 1, 0
    %v747 = vsel %vm683, 1, 0
    %v748 = vsel %vm684, 1, 0
    %v749 = vsel %vm685, 1, 0
    %v750 = vsel %vm686, 1, 0
    %v751 = vsel %vm687, 1, 0
    %v752 = vsel %vm688, 1, 0
    %v753 = vsel %vm689, 1, 0
    %v754 = vsel %vm690, 1, 0
    %v755 = vsel %vm691, 1, 0
    %v756 = vsel %vm692, 1, 0
    %v757 = vsel %vm693, 1, 0
    %v758 = vsel %vm694, 1, 0
    %v759 = vsel %vm695, 1, 0
    %v760 = vsel %vm696, 1, 0
    %v761 = vsel %vm697, 1, 0
    %v762 = vsel %vm698, 1, 0
    %v763 = vsel %vm699, 1, 0
    %v764 = vsel %vm700, 1, 0
    %v765 = vsel %vm701, 1, 0
    %v766 = vcvt.s32.f32 %v702
    %v767 = vcvt.s32.f32 %v703
    %v768 = vcvt.s32.f32 %v704
    %v769 = vcvt.s32.f32 %v705
    %v770 = vcvt.s32.f32 %v706
    %v771 = vcvt.s32.f32 %v707
    %v772 = vcvt.s32.f32 %v708
    %v773 = vcvt.s32.f32 %v709
    %v774 = vcvt.s32.f32 %v710
    %v775 = vcvt.s32.f32 %v711
    %v776 = vcvt.s32.f32 %v712
    %v777 = vcvt.s32.f32 %v713
    %v778 = vcvt.s32.f32 %v714
    %v779 = vcvt.s32.f32 %v715
    %v780 = vcvt.s32.f32 %v716
    %v781 = vcvt.s32.f32 %v717
    %v782 = vcvt.s32.f32 %v718
    %v783 = vcvt.s32.f32 %v719
    %v784 = vcvt.s32.f32 %v720
    %v785 = vcvt.s32.f32 %v721
    %v786 = vcvt.s32.f32 %v722
    %v787 = vcvt.s32.f32 %v723
    %v788 = vcvt.s32.f32 %v724
    %v789 = vcvt.s32.f32 %v725
    %v790 = vcvt.s32.f32 %v726
    %v791 = vcvt.s32.f32 %v727
    %v792 = vcvt.s32.f32 %v728
    %v793 = vcvt.s32.f32 %v729
    %v794 = vcvt.s32.f32 %v730
    %v795 = vcvt.s32.f32 %v731
    %v796 = vcvt.s32.f32 %v732
    %v797 = vcvt.s32.f32 %v733
    %v798 = vcvt.s32.f32 %v734
    %v799 = vcvt.s32.f32 %v735
    %v800 = vcvt.s32.f32 %v736
    %v801 = vcvt.s32.f32 %v737
    %v802 = vcvt.s32.f32 %v738
    %v803 = vcvt.s32.f32 %v739
    %v804 = vcvt.s32.f32 %v740
    %v805 = vcvt.s32.f32 %v741
    %v806 = vcvt.s32.f32 %v742
    %v807 = vcvt.s32.f32 %v743
    %v808 = vcvt.s32.f32 %v744
    %v809 = vcvt.s32.f32 %v745
    %v810 = vcvt.s32.f32 %v746
    %v811 = vcvt.s32.f32 %v747
    %v812 = vcvt.s32.f32 %v748
    %v813 = vcvt.s32.f32 %v749
    %v814 = vcvt.s32.f32 %v750
    %v815 = vcvt.s32.f32 %v751
    %v816 = vcvt.s32.f32 %v752
    %v817 = vcvt.s32.f32 %v753
    %v818 = vcvt.s32.f32 %v754
    %v819 = vcvt.s32.f32 %v755
    %v820 = vcvt.s32.f32 %v756
    %v821 = vcvt.s32.f32 %v757
    %v822 = vcvt.s32.f32 %v758
    %v823 = vcvt.s32.f32 %v759
    %v824 = vcvt.s32.f32 %v760
    %v825 = vcvt.s32.f32 %v761
    %v826 = vcvt.s32.f32 %v762
    %v827 = vcvt.s32.f32 %v763
    %v828 = vcvt.s32.f32 %v764
    %v829 = vcvt.s32.f32 %v765
    %v830 = vpack.c.bf16 %v770, %v766
    %v831 = vpack.c.bf16 %v771, %v767
    %v832 = vpack.c.bf16 %v772, %v768
    %v833 = vpack.c.bf16 %v773, %v769
    %v834 = vpack.c.bf16 %v778, %v774
    %v835 = vpack.c.bf16 %v779, %v775
    %v836 = vpack.c.bf16 %v780, %v776
    %v837 = vpack.c.bf16 %v781, %v777
    %v838 = vpack.c.bf16 %v786, %v782
    %v839 = vpack.c.bf16 %v787, %v783
    %v840 = vpack.c.bf16 %v788, %v784
    %v841 = vpack.c.bf16 %v789, %v785
    %v842 = vpack.c.bf16 %v794, %v790
    %v843 = vpack.c.bf16 %v795, %v791
    %v844 = vpack.c.bf16 %v796, %v792
    %v845 = vpack.c.bf16 %v797, %v793
    %v846 = vpack.c.bf16 %v802, %v798
    %v847 = vpack.c.bf16 %v803, %v799
    %v848 = vpack.c.bf16 %v804, %v800
    %v849 = vpack.c.bf16 %v805, %v801
    %v850 = vpack.c.bf16 %v810, %v806
    %v851 = vpack.c.bf16 %v811, %v807
    %v852 = vpack.c.bf16 %v812, %v808
    %v853 = vpack.c.bf16 %v813, %v809
    %v854 = vpack.c.bf16 %v818, %v814
    %v855 = vpack.c.bf16 %v819, %v815
    %v856 = vpack.c.bf16 %v820, %v816
    %v857 = vpack.c.bf16 %v821, %v817
    %v858 = vpack.c.bf16 %v826, %v822
    %v859 = vpack.c.bf16 %v827, %v823
    %v860 = vpack.c.bf16 %v828, %v824
    %v861 = vpack.c.bf16 %v829, %v825
    %v862 = vld [vmem:[#allocation2] sm:$0xf]
    %v863 = vld [vmem:[#allocation2 + $0x4] sm:$0xf]
    %v864 = vld [vmem:[#allocation2 + $0x8] sm:$0xf]
    %v865 = vld [vmem:[#allocation2 + $0xc] sm:$0xf]
    %v866 = vld [vmem:[#allocation2 + $0x10] sm:$0xf]
    %v867 = vld [vmem:[#allocation2 + $0x14] sm:$0xf]
    %v868 = vld [vmem:[#allocation2 + $0x18] sm:$0xf]
    %v869 = vld [vmem:[#allocation2 + $0x1c] sm:$0xf]
    %v870 = vld [vmem:[#allocation2 + $0x20] sm:$0xf]
    %v871 = vld [vmem:[#allocation2 + $0x24] sm:$0xf]
    %v872 = vld [vmem:[#allocation2 + $0x28] sm:$0xf]
    %v873 = vld [vmem:[#allocation2 + $0x2c] sm:$0xf]
    %v874 = vld [vmem:[#allocation2 + $0x30] sm:$0xf]
    %v875 = vld [vmem:[#allocation2 + $0x34] sm:$0xf]
    %v876 = vld [vmem:[#allocation2 + $0x38] sm:$0xf]
    %v877 = vld [vmem:[#allocation2 + $0x3c] sm:$0xf]
    %v878 = vld [vmem:[#allocation2 + $0x40] sm:$0xf]
    %v879 = vld [vmem:[#allocation2 + $0x44] sm:$0xf]
    %v880 = vld [vmem:[#allocation2 + $0x48] sm:$0xf]
    %v881 = vld [vmem:[#allocation2 + $0x4c] sm:$0xf]
    %v882 = vld [vmem:[#allocation2 + $0x50] sm:$0xf]
    %v883 = vld [vmem:[#allocation2 + $0x54] sm:$0xf]
    %v884 = vld [vmem:[#allocation2 + $0x58] sm:$0xf]
    %v885 = vld [vmem:[#allocation2 + $0x5c] sm:$0xf]
    %v886 = vld [vmem:[#allocation2 + $0x60] sm:$0xf]
    %v887 = vld [vmem:[#allocation2 + $0x64] sm:$0xf]
    %v888 = vld [vmem:[#allocation2 + $0x68] sm:$0xf]
    %v889 = vld [vmem:[#allocation2 + $0x6c] sm:$0xf]
    %v890 = vld [vmem:[#allocation2 + $0x70] sm:$0xf]
    %v891 = vld [vmem:[#allocation2 + $0x74] sm:$0xf]
    %v892 = vld [vmem:[#allocation2 + $0x78] sm:$0xf]
    %v893 = vld [vmem:[#allocation2 + $0x7c] sm:$0xf]
    %v894 = vld [vmem:[#allocation2 + $0x80] sm:$0xf]
    %v895 = vld [vmem:[#allocation2 + $0x84] sm:$0xf]
    %v896 = vld [vmem:[#allocation2 + $0x88] sm:$0xf]
    %v897 = vld [vmem:[#allocation2 + $0x8c] sm:$0xf]
    %v898 = vld [vmem:[#allocation2 + $0x90] sm:$0xf]
    %v899 = vld [vmem:[#allocation2 + $0x94] sm:$0xf]
    %v900 = vld [vmem:[#allocation2 + $0x98] sm:$0xf]
    %v901 = vld [vmem:[#allocation2 + $0x9c] sm:$0xf]
    %v902 = vld [vmem:[#allocation2 + $0xa0] sm:$0xf]
    %v903 = vld [vmem:[#allocation2 + $0xa4] sm:$0xf]
    %v904 = vld [vmem:[#allocation2 + $0xa8] sm:$0xf]
    %v905 = vld [vmem:[#allocation2 + $0xac] sm:$0xf]
    %v906 = vld [vmem:[#allocation2 + $0xb0] sm:$0xf]
    %v907 = vld [vmem:[#allocation2 + $0xb4] sm:$0xf]
    %v908 = vld [vmem:[#allocation2 + $0xb8] sm:$0xf]
    %v909 = vld [vmem:[#allocation2 + $0xbc] sm:$0xf]
    %v910 = vld [vmem:[#allocation2 + $0xc0] sm:$0xf]
    %v911 = vld [vmem:[#allocation2 + $0xc4] sm:$0xf]
    %v912 = vld [vmem:[#allocation2 + $0xc8] sm:$0xf]
    %v913 = vld [vmem:[#allocation2 + $0xcc] sm:$0xf]
    %v914 = vld [vmem:[#allocation2 + $0xd0] sm:$0xf]
    %v915 = vld [vmem:[#allocation2 + $0xd4] sm:$0xf]
    %v916 = vld [vmem:[#allocation2 + $0xd8] sm:$0xf]
    %v917 = vld [vmem:[#allocation2 + $0xdc] sm:$0xf]
    %v918 = vld [vmem:[#allocation2 + $0xe0] sm:$0xf]
    %v919 = vld [vmem:[#allocation2 + $0xe4] sm:$0xf]
    %v920 = vld [vmem:[#allocation2 + $0xe8] sm:$0xf]
    %v921 = vld [vmem:[#allocation2 + $0xec] sm:$0xf]
    %v922 = vld [vmem:[#allocation2 + $0xf0] sm:$0xf]
    %v923 = vld [vmem:[#allocation2 + $0xf4] sm:$0xf]
    %v924 = vld [vmem:[#allocation2 + $0xf8] sm:$0xf]
    %v925 = vld [vmem:[#allocation2 + $0xfc] sm:$0xf]
    %v926 = vld [vmem:[%s2] sm:$0x1]
    %v928 = vlaneseq
    %v929 = vshrl.u32 %v928, 7
    %v930 = vsub.s32 0, %v929
    %v931 = vrot.slane %v926, %v930
    %v997 = vunpack.c.l.b16 %v862
    %v998 = vunpack.c.l.b16 %v863
    %v999 = vunpack.c.l.b16 %v864
    %v1000 = vunpack.c.l.b16 %v865
    %v1001 = vunpack.c.l.b16 %v866
    %v1002 = vunpack.c.l.b16 %v867
    %v1003 = vunpack.c.l.b16 %v868
    %v1004 = vunpack.c.l.b16 %v869
    %v1005 = vunpack.c.l.b16 %v870
    %v1006 = vunpack.c.l.b16 %v871
    %v1007 = vunpack.c.l.b16 %v872
    %v1008 = vunpack.c.l.b16 %v873
    %v1009 = vunpack.c.l.b16 %v874
    %v1010 = vunpack.c.l.b16 %v875
    %v1011 = vunpack.c.l.b16 %v876
    %v1012 = vunpack.c.l.b16 %v877
    %v1013 = vunpack.c.l.b16 %v878
    %v1014 = vunpack.c.l.b16 %v879
    %v1015 = vunpack.c.l.b16 %v880
    %v1016 = vunpack.c.l.b16 %v881
    %v1017 = vunpack.c.l.b16 %v882
    %v1018 = vunpack.c.l.b16 %v883
    %v1019 = vunpack.c.l.b16 %v884
    %v1020 = vunpack.c.l.b16 %v885
    %v1021 = vunpack.c.l.b16 %v886
    %v1022 = vunpack.c.l.b16 %v887
    %v1023 = vunpack.c.l.b16 %v888
    %v1024 = vunpack.c.l.b16 %v889
    %v1025 = vunpack.c.l.b16 %v890
    %v1026 = vunpack.c.l.b16 %v891
    %v1027 = vunpack.c.l.b16 %v892
    %v1028 = vunpack.c.l.b16 %v893
    %v1029 = vunpack.c.l.b16 %v894
    %v1030 = vunpack.c.l.b16 %v895
    %v1031 = vunpack.c.l.b16 %v896
    %v1032 = vunpack.c.l.b16 %v897
    %v1033 = vunpack.c.l.b16 %v898
    %v1034 = vunpack.c.l.b16 %v899
    %v1035 = vunpack.c.l.b16 %v900
    %v1036 = vunpack.c.l.b16 %v901
    %v1037 = vunpack.c.l.b16 %v902
    %v1038 = vunpack.c.l.b16 %v903
    %v1039 = vunpack.c.l.b16 %v904
    %v1040 = vunpack.c.l.b16 %v905
    %v1041 = vunpack.c.l.b16 %v906
    %v1042 = vunpack.c.l.b16 %v907
    %v1043 = vunpack.c.l.b16 %v908
    %v1044 = vunpack.c.l.b16 %v909
    %v1045 = vunpack.c.l.b16 %v910
    %v1046 = vunpack.c.l.b16 %v911
    %v1047 = vunpack.c.l.b16 %v912
    %v1048 = vunpack.c.l.b16 %v913
    %v1049 = vunpack.c.l.b16 %v914
    %v1050 = vunpack.c.l.b16 %v915
    %v1051 = vunpack.c.l.b16 %v916
    %v1052 = vunpack.c.l.b16 %v917
    %v1053 = vunpack.c.l.b16 %v918
    %v1054 = vunpack.c.l.b16 %v919
    %v1055 = vunpack.c.l.b16 %v920
    %v1056 = vunpack.c.l.b16 %v921
    %v1057 = vunpack.c.l.b16 %v922
    %v1058 = vunpack.c.l.b16 %v923
    %v1059 = vunpack.c.l.b16 %v924
    %v1060 = vunpack.c.l.b16 %v925
    %v1061 = vpack.c.b16 %v998, %v997
    %v1062 = vpack.c.b16 %v1000, %v999
    %v1063 = vpack.c.b16 %v1002, %v1001
    %v1064 = vpack.c.b16 %v1004, %v1003
    %v1065 = vpack.c.b16 %v1006, %v1005
    %v1066 = vpack.c.b16 %v1008, %v1007
    %v1067 = vpack.c.b16 %v1010, %v1009
    %v1068 = vpack.c.b16 %v1012, %v1011
    %v1069 = vpack.c.b16 %v1014, %v1013
    %v1070 = vpack.c.b16 %v1016, %v1015
    %v1071 = vpack.c.b16 %v1018, %v1017
    %v1072 = vpack.c.b16 %v1020, %v1019
    %v1073 = vpack.c.b16 %v1022, %v1021
    %v1074 = vpack.c.b16 %v1024, %v1023
    %v1075 = vpack.c.b16 %v1026, %v1025
    %v1076 = vpack.c.b16 %v1028, %v1027
    %v1077 = vpack.c.b16 %v1030, %v1029
    %v1078 = vpack.c.b16 %v1032, %v1031
    %v1079 = vpack.c.b16 %v1034, %v1033
    %v1080 = vpack.c.b16 %v1036, %v1035
    %v1081 = vpack.c.b16 %v1038, %v1037
    %v1082 = vpack.c.b16 %v1040, %v1039
    %v1083 = vpack.c.b16 %v1042, %v1041
    %v1084 = vpack.c.b16 %v1044, %v1043
    %v1085 = vpack.c.b16 %v1046, %v1045
    %v1086 = vpack.c.b16 %v1048, %v1047
    %v1087 = vpack.c.b16 %v1050, %v1049
    %v1088 = vpack.c.b16 %v1052, %v1051
    %v1089 = vpack.c.b16 %v1054, %v1053
    %v1090 = vpack.c.b16 %v1056, %v1055
    %v1091 = vpack.c.b16 %v1058, %v1057
    %v1092 = vpack.c.b16 %v1060, %v1059
    %1125 = vmatprep.subr.bf16.mxu0 0
    %1126 = vmatpush1.bf16.msra.mxu0 %v1068
    %1127 = vmatprep.subr.bf16.mxu0 0
    %1128 = vmatpush1.bf16.msra.mxu0 %v1067
    %1129 = vmatprep.subr.bf16.mxu0 0
    %1130 = vmatpush1.bf16.msra.mxu0 %v1066
    %1131 = vmatprep.subr.bf16.mxu0 0
    %1132 = vmatpush1.bf16.msra.mxu0 %v1065
    %1133 = vmatprep.subr.bf16.mxu0 0
    %1134 = vmatpush1.bf16.msra.mxu0 %v1064
    %1135 = vmatprep.subr.bf16.mxu0 0
    %1136 = vmatpush1.bf16.msra.mxu0 %v1063
    %1137 = vmatprep.subr.bf16.mxu0 0
    %1138 = vmatpush1.bf16.msra.mxu0 %v1062
    %1139 = vmatprep.subr.bf16.mxu0 0
    %1140 = vmatpush1.bf16.msra.mxu0 %v1061
    %1141 = vmatprep.subr.bf16.mxu0 0
    %1142 = vmatpush2.bf16.msra.mxu0 %v1076
    %1143 = vmatprep.subr.bf16.mxu0 0
    %1144 = vmatpush2.bf16.msra.mxu0 %v1075
    %1145 = vmatprep.subr.bf16.mxu0 0
    %1146 = vmatpush2.bf16.msra.mxu0 %v1074
    %1147 = vmatprep.subr.bf16.mxu0 0
    %1148 = vmatpush2.bf16.msra.mxu0 %v1073
    %1149 = vmatprep.subr.bf16.mxu0 0
    %1150 = vmatpush2.bf16.msra.mxu0 %v1072
    %1151 = vmatprep.subr.bf16.mxu0 0
    %1152 = vmatpush2.bf16.msra.mxu0 %v1071
    %1153 = vmatprep.subr.bf16.mxu0 0
    %1154 = vmatpush2.bf16.msra.mxu0 %v1070
    %1155 = vmatprep.subr.bf16.mxu0 0
    %1156 = vmatpush2.bf16.msra.mxu0 %v1069
    %1157 = vmatprep.mubr.bf16.mxu0 %v831
    %1158 = vmatmul.mubr.bf16.gmra.mxu0 %v830
    %v1159 = vpop.f32.mrf.mxu0
    %v1160 = vadd.f32 %v931, %v1159
    %v1161 = vpop.f32.mrf.mxu0
    %v1162 = vpop.f32.mrf.mxu0
    %v1163 = vadd.f32 %v931, %v1162
    %v1164 = vpop.f32.mrf.mxu0
    %1165 = vmatprep.mubr.bf16.mxu0 %v835
    %1166 = vmatmul.mubr.bf16.gmra.mxu0 %v834
    %v1167 = vpop.f32.mrf.mxu0
    %v1168 = vadd.f32 %v931, %v1167
    %v1169 = vpop.f32.mrf.mxu0
    %v1170 = vpop.f32.mrf.mxu0
    %v1171 = vadd.f32 %v931, %v1170
    %v1172 = vpop.f32.mrf.mxu0
    %1173 = vmatprep.mubr.bf16.mxu0 %v839
    %1174 = vmatmul.mubr.bf16.gmra.mxu0 %v838
    %v1175 = vpop.f32.mrf.mxu0
    %v1176 = vadd.f32 %v931, %v1175
    %v1177 = vpop.f32.mrf.mxu0
    %v1178 = vpop.f32.mrf.mxu0
    %v1179 = vadd.f32 %v931, %v1178
    %v1180 = vpop.f32.mrf.mxu0
    %1181 = vmatprep.mubr.bf16.mxu0 %v843
    %1182 = vmatmul.mubr.bf16.gmra.mxu0 %v842
    %v1183 = vpop.f32.mrf.mxu0
    %v1184 = vadd.f32 %v931, %v1183
    %v1185 = vpop.f32.mrf.mxu0
    %v1186 = vpop.f32.mrf.mxu0
    %v1187 = vadd.f32 %v931, %v1186
    %v1188 = vpop.f32.mrf.mxu0
    %1189 = vmatprep.mubr.bf16.mxu0 %v847
    %1190 = vmatmul.mubr.bf16.gmra.mxu0 %v846
    %v1191 = vpop.f32.mrf.mxu0
    %v1192 = vadd.f32 %v931, %v1191
    %v1193 = vpop.f32.mrf.mxu0
    %v1194 = vpop.f32.mrf.mxu0
    %v1195 = vadd.f32 %v931, %v1194
    %v1196 = vpop.f32.mrf.mxu0
    %1197 = vmatprep.mubr.bf16.mxu0 %v851
    %1198 = vmatmul.mubr.bf16.gmra.mxu0 %v850
    %v1199 = vpop.f32.mrf.mxu0
    %v1200 = vadd.f32 %v931, %v1199
    %v1201 = vpop.f32.mrf.mxu0
    %v1202 = vpop.f32.mrf.mxu0
    %v1203 = vadd.f32 %v931, %v1202
    %v1204 = vpop.f32.mrf.mxu0
    %1205 = vmatprep.mubr.bf16.mxu0 %v855
    %1206 = vmatmul.mubr.bf16.gmra.mxu0 %v854
    %v1207 = vpop.f32.mrf.mxu0
    %v1208 = vadd.f32 %v931, %v1207
    %v1209 = vpop.f32.mrf.mxu0
    %v1210 = vpop.f32.mrf.mxu0
    %v1211 = vadd.f32 %v931, %v1210
    %v1212 = vpop.f32.mrf.mxu0
    %1213 = vmatprep.mubr.bf16.mxu0 %v859
    %1214 = vmatmul.mubr.bf16.gmra.mxu0 %v858
    %v1215 = vpop.f32.mrf.mxu0
    %v1216 = vadd.f32 %v931, %v1215
    %v1217 = vpop.f32.mrf.mxu0
    %v1218 = vpop.f32.mrf.mxu0
    %v1219 = vadd.f32 %v931, %v1218
    %v1220 = vpop.f32.mrf.mxu0
    %1221 = vdwg.mxu0
    %1222 = vmatprep.subr.bf16.mxu0 0
    %1223 = vmatpush1.bf16.msra.mxu0 %v1084
    %1224 = vmatprep.subr.bf16.mxu0 0
    %1225 = vmatpush1.bf16.msra.mxu0 %v1083
    %1226 = vmatprep.subr.bf16.mxu0 0
    %1227 = vmatpush1.bf16.msra.mxu0 %v1082
    %1228 = vmatprep.subr.bf16.mxu0 0
    %1229 = vmatpush1.bf16.msra.mxu0 %v1081
    %1230 = vmatprep.subr.bf16.mxu0 0
    %1231 = vmatpush1.bf16.msra.mxu0 %v1080
    %1232 = vmatprep.subr.bf16.mxu0 0
    %1233 = vmatpush1.bf16.msra.mxu0 %v1079
    %1234 = vmatprep.subr.bf16.mxu0 0
    %1235 = vmatpush1.bf16.msra.mxu0 %v1078
    %1236 = vmatprep.subr.bf16.mxu0 0
    %1237 = vmatpush1.bf16.msra.mxu0 %v1077
    %1238 = vmatprep.subr.bf16.mxu0 0
    %1239 = vmatpush2.bf16.msra.mxu0 %v1092
    %1240 = vmatprep.subr.bf16.mxu0 0
    %1241 = vmatpush2.bf16.msra.mxu0 %v1091
    %1242 = vmatprep.subr.bf16.mxu0 0
    %1243 = vmatpush2.bf16.msra.mxu0 %v1090
    %1244 = vmatprep.subr.bf16.mxu0 0
    %1245 = vmatpush2.bf16.msra.mxu0 %v1089
    %1246 = vmatprep.subr.bf16.mxu0 0
    %1247 = vmatpush2.bf16.msra.mxu0 %v1088
    %1248 = vmatprep.subr.bf16.mxu0 0
    %1249 = vmatpush2.bf16.msra.mxu0 %v1087
    %1250 = vmatprep.subr.bf16.mxu0 0
    %1251 = vmatpush2.bf16.msra.mxu0 %v1086
    %1252 = vmatprep.subr.bf16.mxu0 0
    %1253 = vmatpush2.bf16.msra.mxu0 %v1085
    %1254 = vmatprep.mubr.bf16.mxu0 %v833
    %1255 = vmatmul.mubr.bf16.gmra.mxu0 %v832
    %v1256 = vpop.f32.mrf.mxu0
    %v1257 = vadd.f32 %v1160, %v1256
    %v1258 = vpop.f32.mrf.mxu0
    %v1259 = vpop.f32.mrf.mxu0
    %v1260 = vadd.f32 %v1163, %v1259
    %v1261 = vpop.f32.mrf.mxu0
    %1262 = vmatprep.mubr.bf16.mxu0 %v837
    %1263 = vmatmul.mubr.bf16.gmra.mxu0 %v836
    %v1264 = vpop.f32.mrf.mxu0
    %v1265 = vadd.f32 %v1168, %v1264
    %v1266 = vpop.f32.mrf.mxu0
    %v1267 = vpop.f32.mrf.mxu0
    %v1268 = vadd.f32 %v1171, %v1267
    %v1269 = vpop.f32.mrf.mxu0
    %1270 = vmatprep.mubr.bf16.mxu0 %v841
    %1271 = vmatmul.mubr.bf16.gmra.mxu0 %v840
    %v1272 = vpop.f32.mrf.mxu0
    %v1273 = vadd.f32 %v1176, %v1272
    %v1274 = vpop.f32.mrf.mxu0
    %v1275 = vpop.f32.mrf.mxu0
    %v1276 = vadd.f32 %v1179, %v1275
    %v1277 = vpop.f32.mrf.mxu0
    %1278 = vmatprep.mubr.bf16.mxu0 %v845
    %1279 = vmatmul.mubr.bf16.gmra.mxu0 %v844
    %v1280 = vpop.f32.mrf.mxu0
    %v1281 = vadd.f32 %v1184, %v1280
    %v1282 = vpop.f32.mrf.mxu0
    %v1283 = vpop.f32.mrf.mxu0
    %v1284 = vadd.f32 %v1187, %v1283
    %v1285 = vpop.f32.mrf.mxu0
    %1286 = vmatprep.mubr.bf16.mxu0 %v849
    %1287 = vmatmul.mubr.bf16.gmra.mxu0 %v848
    %v1288 = vpop.f32.mrf.mxu0
    %v1289 = vadd.f32 %v1192, %v1288
    %v1290 = vpop.f32.mrf.mxu0
    %v1291 = vpop.f32.mrf.mxu0
    %v1292 = vadd.f32 %v1195, %v1291
    %v1293 = vpop.f32.mrf.mxu0
    %1294 = vmatprep.mubr.bf16.mxu0 %v853
    %1295 = vmatmul.mubr.bf16.gmra.mxu0 %v852
    %v1296 = vpop.f32.mrf.mxu0
    %v1297 = vadd.f32 %v1200, %v1296
    %v1298 = vpop.f32.mrf.mxu0
    %v1299 = vpop.f32.mrf.mxu0
    %v1300 = vadd.f32 %v1203, %v1299
    %v1301 = vpop.f32.mrf.mxu0
    %1302 = vmatprep.mubr.bf16.mxu0 %v857
    %1303 = vmatmul.mubr.bf16.gmra.mxu0 %v856
    %v1304 = vpop.f32.mrf.mxu0
    %v1305 = vadd.f32 %v1208, %v1304
    %v1306 = vpop.f32.mrf.mxu0
    %v1307 = vpop.f32.mrf.mxu0
    %v1308 = vadd.f32 %v1211, %v1307
    %v1309 = vpop.f32.mrf.mxu0
    %1310 = vmatprep.mubr.bf16.mxu0 %v861
    %1311 = vmatmul.mubr.bf16.gmra.mxu0 %v860
    %v1312 = vpop.f32.mrf.mxu0
    %v1313 = vadd.f32 %v1216, %v1312
    %v1314 = vpop.f32.mrf.mxu0
    %v1315 = vpop.f32.mrf.mxu0
    %v1316 = vadd.f32 %v1219, %v1315
    %v1317 = vpop.f32.mrf.mxu0
    %1318 = vdwg.mxu0
    %v1319 = vtanh.pop %v1257
    %v1320 = vtanh.pop %v1260
    %v1321 = vtanh.pop %v1265
    %v1322 = vtanh.pop %v1268
    %v1323 = vtanh.pop %v1273
    %v1324 = vtanh.pop %v1276
    %v1325 = vtanh.pop %v1281
    %v1326 = vtanh.pop %v1284
    %v1327 = vtanh.pop %v1289
    %v1328 = vtanh.pop %v1292
    %v1329 = vtanh.pop %v1297
    %v1330 = vtanh.pop %v1300
    %v1331 = vtanh.pop %v1305
    %v1332 = vtanh.pop %v1308
    %v1333 = vtanh.pop %v1313
    %v1334 = vtanh.pop %v1316
    %v1335 = vld [vmem:[%s3] sm:$0xf]
    %v1336 = vld [vmem:[%s3 + $0x4] sm:$0xf]
    %v1337 = vld [vmem:[%s3 + $0x8] sm:$0xf]
    %v1338 = vld [vmem:[%s3 + $0xc] sm:$0xf]
    %v1339 = vld [vmem:[%s3 + $0x10] sm:$0xf]
    %v1340 = vld [vmem:[%s3 + $0x14] sm:$0xf]
    %v1341 = vld [vmem:[%s3 + $0x18] sm:$0xf]
    %v1342 = vld [vmem:[%s3 + $0x1c] sm:$0xf]
    %v1343 = vld [vmem:[%s3 + $0x20] sm:$0xf]
    %v1344 = vld [vmem:[%s3 + $0x24] sm:$0xf]
    %v1345 = vld [vmem:[%s3 + $0x28] sm:$0xf]
    %v1346 = vld [vmem:[%s3 + $0x2c] sm:$0xf]
    %v1347 = vld [vmem:[%s3 + $0x30] sm:$0xf]
    %v1348 = vld [vmem:[%s3 + $0x34] sm:$0xf]
    %v1349 = vld [vmem:[%s3 + $0x38] sm:$0xf]
    %v1350 = vld [vmem:[%s3 + $0x3c] sm:$0xf]
    %v1351 = vld [vmem:[%s4] sm:$0x1]
    %v1352 = vpack.c.bf16 %v1320, %v1319
    %v1353 = vpack.c.bf16 %v1322, %v1321
    %v1354 = vpack.c.bf16 %v1324, %v1323
    %v1355 = vpack.c.bf16 %v1326, %v1325
    %v1356 = vpack.c.bf16 %v1328, %v1327
    %v1357 = vpack.c.bf16 %v1330, %v1329
    %v1358 = vpack.c.bf16 %v1332, %v1331
    %v1359 = vpack.c.bf16 %v1334, %v1333
    %v1361 = vlaneseq
    %v1362 = vshrl.u32 %v1361, 7
    %v1363 = vsub.s32 0, %v1362
    %v1364 = vrot.slane %v1351, %v1363
    %v1382 = vunpack.c.l.b16 %v1335
    %v1383 = vunpack.c.l.b16 %v1336
    %v1384 = vunpack.c.l.b16 %v1337
    %v1385 = vunpack.c.l.b16 %v1338
    %v1386 = vunpack.c.l.b16 %v1339
    %v1387 = vunpack.c.l.b16 %v1340
    %v1388 = vunpack.c.l.b16 %v1341
    %v1389 = vunpack.c.l.b16 %v1342
    %v1390 = vunpack.c.l.b16 %v1343
    %v1391 = vunpack.c.l.b16 %v1344
    %v1392 = vunpack.c.l.b16 %v1345
    %v1393 = vunpack.c.l.b16 %v1346
    %v1394 = vunpack.c.l.b16 %v1347
    %v1395 = vunpack.c.l.b16 %v1348
    %v1396 = vunpack.c.l.b16 %v1349
    %v1397 = vunpack.c.l.b16 %v1350
    %v1398 = vpack.c.b16 %v1383, %v1382
    %v1399 = vpack.c.b16 %v1385, %v1384
    %v1400 = vpack.c.b16 %v1387, %v1386
    %v1401 = vpack.c.b16 %v1389, %v1388
    %v1402 = vpack.c.b16 %v1391, %v1390
    %v1403 = vpack.c.b16 %v1393, %v1392
    %v1404 = vpack.c.b16 %v1395, %v1394
    %v1405 = vpack.c.b16 %v1397, %v1396
    %1414 = vmatprep.subr.bf16.mxu0 0
    %1415 = vmatpush1.bf16.msra.mxu0 %v1405
    %1416 = vmatprep.subr.bf16.mxu0 0
    %1417 = vmatpush1.bf16.msra.mxu0 %v1404
    %1418 = vmatprep.subr.bf16.mxu0 0
    %1419 = vmatpush1.bf16.msra.mxu0 %v1403
    %1420 = vmatprep.subr.bf16.mxu0 0
    %1421 = vmatpush1.bf16.msra.mxu0 %v1402
    %1422 = vmatprep.subr.bf16.mxu0 0
    %1423 = vmatpush1.bf16.msra.mxu0 %v1401
    %1424 = vmatprep.subr.bf16.mxu0 0
    %1425 = vmatpush1.bf16.msra.mxu0 %v1400
    %1426 = vmatprep.subr.bf16.mxu0 0
    %1427 = vmatpush1.bf16.msra.mxu0 %v1399
    %1428 = vmatprep.subr.bf16.mxu0 0
    %1429 = vmatpush1.bf16.msra.mxu0 %v1398
    %1430 = vmatprep.subr.bf16.mxu0 0
    %1431 = vmatpush2.bf16.msra.mxu0 0
    %1432 = vmatprep.subr.bf16.mxu0 0
    %1433 = vmatpush2.bf16.msra.mxu0 0
    %1434 = vmatprep.subr.bf16.mxu0 0
    %1435 = vmatpush2.bf16.msra.mxu0 0
    %1436 = vmatprep.subr.bf16.mxu0 0
    %1437 = vmatpush2.bf16.msra.mxu0 0
    %1438 = vmatprep.subr.bf16.mxu0 0
    %1439 = vmatpush2.bf16.msra.mxu0 0
    %1440 = vmatprep.subr.bf16.mxu0 0
    %1441 = vmatpush2.bf16.msra.mxu0 0
    %1442 = vmatprep.subr.bf16.mxu0 0
    %1443 = vmatpush2.bf16.msra.mxu0 0
    %1444 = vmatprep.subr.bf16.mxu0 0
    %1445 = vmatpush2.bf16.msra.mxu0 0
    %1446 = vmatprep.mubr.bf16.mxu0 0
    %1447 = vmatmul.mubr.bf16.gmra.mxu0 %v1352
    %v1448 = vpop.f32.mrf.mxu0
    %v1449 = vadd.f32 %v1364, %v1448
    %v1450 = vpop.f32.mrf.mxu0
    %v1451 = vpop.f32.mrf.mxu0
    %v1452 = vadd.f32 %v1364, %v1451
    %v1453 = vpop.f32.mrf.mxu0
    %1454 = vmatprep.mubr.bf16.mxu0 0
    %1455 = vmatmul.mubr.bf16.gmra.mxu0 %v1353
    %v1456 = vpop.f32.mrf.mxu0
    %v1457 = vadd.f32 %v1364, %v1456
    %v1458 = vpop.f32.mrf.mxu0
    %v1459 = vpop.f32.mrf.mxu0
    %v1460 = vadd.f32 %v1364, %v1459
    %v1461 = vpop.f32.mrf.mxu0
    %1462 = vmatprep.mubr.bf16.mxu0 0
    %1463 = vmatmul.mubr.bf16.gmra.mxu0 %v1354
    %v1464 = vpop.f32.mrf.mxu0
    %v1465 = vadd.f32 %v1364, %v1464
    %v1466 = vpop.f32.mrf.mxu0
    %v1467 = vpop.f32.mrf.mxu0
    %v1468 = vadd.f32 %v1364, %v1467
    %v1469 = vpop.f32.mrf.mxu0
    %1470 = vmatprep.mubr.bf16.mxu0 0
    %1471 = vmatmul.mubr.bf16.gmra.mxu0 %v1355
    %v1472 = vpop.f32.mrf.mxu0
    %v1473 = vadd.f32 %v1364, %v1472
    %v1474 = vpop.f32.mrf.mxu0
    %v1475 = vpop.f32.mrf.mxu0
    %v1476 = vadd.f32 %v1364, %v1475
    %v1477 = vpop.f32.mrf.mxu0
    %1478 = vmatprep.mubr.bf16.mxu0 0
    %1479 = vmatmul.mubr.bf16.gmra.mxu0 %v1356
    %v1480 = vpop.f32.mrf.mxu0
    %v1481 = vadd.f32 %v1364, %v1480
    %v1482 = vpop.f32.mrf.mxu0
    %v1483 = vpop.f32.mrf.mxu0
    %v1484 = vadd.f32 %v1364, %v1483
    %v1485 = vpop.f32.mrf.mxu0
    %1486 = vmatprep.mubr.bf16.mxu0 0
    %1487 = vmatmul.mubr.bf16.gmra.mxu0 %v1357
    %v1488 = vpop.f32.mrf.mxu0
    %v1489 = vadd.f32 %v1364, %v1488
    %v1490 = vpop.f32.mrf.mxu0
    %v1491 = vpop.f32.mrf.mxu0
    %v1492 = vadd.f32 %v1364, %v1491
    %v1493 = vpop.f32.mrf.mxu0
    %1494 = vmatprep.mubr.bf16.mxu0 0
    %1495 = vmatmul.mubr.bf16.gmra.mxu0 %v1358
    %v1496 = vpop.f32.mrf.mxu0
    %v1497 = vadd.f32 %v1364, %v1496
    %v1498 = vpop.f32.mrf.mxu0
    %v1499 = vpop.f32.mrf.mxu0
    %v1500 = vadd.f32 %v1364, %v1499
    %v1501 = vpop.f32.mrf.mxu0
    %1502 = vmatprep.mubr.bf16.mxu0 0
    %1503 = vmatmul.mubr.bf16.gmra.mxu0 %v1359
    %v1504 = vpop.f32.mrf.mxu0
    %v1505 = vadd.f32 %v1364, %v1504
    %v1506 = vpop.f32.mrf.mxu0
    %v1507 = vpop.f32.mrf.mxu0
    %v1508 = vadd.f32 %v1364, %v1507
    %v1509 = vpop.f32.mrf.mxu0
    %1510 = vdwg.mxu0
    %v1511 = vtanh.pop %v1449
    %v1512 = vtanh.pop %v1452
    %v1513 = vtanh.pop %v1457
    %v1514 = vtanh.pop %v1460
    %v1515 = vtanh.pop %v1465
    %v1516 = vtanh.pop %v1468
    %v1517 = vtanh.pop %v1473
    %v1518 = vtanh.pop %v1476
    %v1519 = vtanh.pop %v1481
    %v1520 = vtanh.pop %v1484
    %v1521 = vtanh.pop %v1489
    %v1522 = vtanh.pop %v1492
    %v1523 = vtanh.pop %v1497
    %v1524 = vtanh.pop %v1500
    %v1525 = vtanh.pop %v1505
    %v1526 = vtanh.pop %v1508
    %v1527 = vld [vmem:[%s5] sm:$0xf]
    %v1528 = vld [vmem:[%s5 + $0x4] sm:$0xf]
    %v1529 = vld [vmem:[%s5 + $0x8] sm:$0xf]
    %v1530 = vld [vmem:[%s5 + $0xc] sm:$0xf]
    %v1531 = vld [vmem:[%s5 + $0x10] sm:$0xf]
    %v1532 = vld [vmem:[%s5 + $0x14] sm:$0xf]
    %v1533 = vld [vmem:[%s5 + $0x18] sm:$0xf]
    %v1534 = vld [vmem:[%s5 + $0x1c] sm:$0xf]
    %v1535 = vld [vmem:[%s5 + $0x20] sm:$0xf]
    %v1536 = vld [vmem:[%s5 + $0x24] sm:$0xf]
    %v1537 = vld [vmem:[%s5 + $0x28] sm:$0xf]
    %v1538 = vld [vmem:[%s5 + $0x2c] sm:$0xf]
    %v1539 = vld [vmem:[%s5 + $0x30] sm:$0xf]
    %v1540 = vld [vmem:[%s5 + $0x34] sm:$0xf]
    %v1541 = vld [vmem:[%s5 + $0x38] sm:$0xf]
    %v1542 = vld [vmem:[%s5 + $0x3c] sm:$0xf]
    %v1543 = vld [vmem:[%s6] sm:$0x1]
    %v1544 = vpack.c.bf16 %v1512, %v1511
    %v1545 = vpack.c.bf16 %v1514, %v1513
    %v1546 = vpack.c.bf16 %v1516, %v1515
    %v1547 = vpack.c.bf16 %v1518, %v1517
    %v1548 = vpack.c.bf16 %v1520, %v1519
    %v1549 = vpack.c.bf16 %v1522, %v1521
    %v1550 = vpack.c.bf16 %v1524, %v1523
    %v1551 = vpack.c.bf16 %v1526, %v1525
    %v1553 = vlaneseq
    %v1554 = vshrl.u32 %v1553, 7
    %v1555 = vsub.s32 0, %v1554
    %v1556 = vrot.slane %v1543, %v1555
    %v1574 = vunpack.c.l.b16 %v1527
    %v1575 = vunpack.c.l.b16 %v1528
    %v1576 = vunpack.c.l.b16 %v1529
    %v1577 = vunpack.c.l.b16 %v1530
    %v1578 = vunpack.c.l.b16 %v1531
    %v1579 = vunpack.c.l.b16 %v1532
    %v1580 = vunpack.c.l.b16 %v1533
    %v1581 = vunpack.c.l.b16 %v1534
    %v1582 = vunpack.c.l.b16 %v1535
    %v1583 = vunpack.c.l.b16 %v1536
    %v1584 = vunpack.c.l.b16 %v1537
    %v1585 = vunpack.c.l.b16 %v1538
    %v1586 = vunpack.c.l.b16 %v1539
    %v1587 = vunpack.c.l.b16 %v1540
    %v1588 = vunpack.c.l.b16 %v1541
    %v1589 = vunpack.c.l.b16 %v1542
    %v1590 = vpack.c.b16 %v1575, %v1574
    %v1591 = vpack.c.b16 %v1577, %v1576
    %v1592 = vpack.c.b16 %v1579, %v1578
    %v1593 = vpack.c.b16 %v1581, %v1580
    %v1594 = vpack.c.b16 %v1583, %v1582
    %v1595 = vpack.c.b16 %v1585, %v1584
    %v1596 = vpack.c.b16 %v1587, %v1586
    %v1597 = vpack.c.b16 %v1589, %v1588
    %1606 = vmatprep.subr.bf16.mxu0 0
    %1607 = vmatpush1.bf16.msra.mxu0 %v1597
    %1608 = vmatprep.subr.bf16.mxu0 0
    %1609 = vmatpush1.bf16.msra.mxu0 %v1596
    %1610 = vmatprep.subr.bf16.mxu0 0
    %1611 = vmatpush1.bf16.msra.mxu0 %v1595
    %1612 = vmatprep.subr.bf16.mxu0 0
    %1613 = vmatpush1.bf16.msra.mxu0 %v1594
    %1614 = vmatprep.subr.bf16.mxu0 0
    %1615 = vmatpush1.bf16.msra.mxu0 %v1593
    %1616 = vmatprep.subr.bf16.mxu0 0
    %1617 = vmatpush1.bf16.msra.mxu0 %v1592
    %1618 = vmatprep.subr.bf16.mxu0 0
    %1619 = vmatpush1.bf16.msra.mxu0 %v1591
    %1620 = vmatprep.subr.bf16.mxu0 0
    %1621 = vmatpush1.bf16.msra.mxu0 %v1590
    %1622 = vmatprep.subr.bf16.mxu0 0
    %1623 = vmatpush2.bf16.msra.mxu0 0
    %1624 = vmatprep.subr.bf16.mxu0 0
    %1625 = vmatpush2.bf16.msra.mxu0 0
    %1626 = vmatprep.subr.bf16.mxu0 0
    %1627 = vmatpush2.bf16.msra.mxu0 0
    %1628 = vmatprep.subr.bf16.mxu0 0
    %1629 = vmatpush2.bf16.msra.mxu0 0
    %1630 = vmatprep.subr.bf16.mxu0 0
    %1631 = vmatpush2.bf16.msra.mxu0 0
    %1632 = vmatprep.subr.bf16.mxu0 0
    %1633 = vmatpush2.bf16.msra.mxu0 0
    %1634 = vmatprep.subr.bf16.mxu0 0
    %1635 = vmatpush2.bf16.msra.mxu0 0
    %1636 = vmatprep.subr.bf16.mxu0 0
    %1637 = vmatpush2.bf16.msra.mxu0 0
    %1638 = vmatprep.mubr.bf16.mxu0 0
    %1639 = vmatmul.mubr.bf16.gmra.mxu0 %v1544
    %v1640 = vpop.f32.mrf.mxu0
    %v1641 = vadd.f32 %v1556, %v1640
    %v1642 = vpop.f32.mrf.mxu0
    %v1643 = vpop.f32.mrf.mxu0
    %v1644 = vadd.f32 %v1556, %v1643
    %v1645 = vpop.f32.mrf.mxu0
    %1646 = vmatprep.mubr.bf16.mxu0 0
    %1647 = vmatmul.mubr.bf16.gmra.mxu0 %v1545
    %v1648 = vpop.f32.mrf.mxu0
    %v1649 = vadd.f32 %v1556, %v1648
    %v1650 = vpop.f32.mrf.mxu0
    %v1651 = vpop.f32.mrf.mxu0
    %v1652 = vadd.f32 %v1556, %v1651
    %v1653 = vpop.f32.mrf.mxu0
    %1654 = vmatprep.mubr.bf16.mxu0 0
    %1655 = vmatmul.mubr.bf16.gmra.mxu0 %v1546
    %v1656 = vpop.f32.mrf.mxu0
    %v1657 = vadd.f32 %v1556, %v1656
    %v1658 = vpop.f32.mrf.mxu0
    %v1659 = vpop.f32.mrf.mxu0
    %v1660 = vadd.f32 %v1556, %v1659
    %v1661 = vpop.f32.mrf.mxu0
    %1662 = vmatprep.mubr.bf16.mxu0 0
    %1663 = vmatmul.mubr.bf16.gmra.mxu0 %v1547
    %v1664 = vpop.f32.mrf.mxu0
    %v1665 = vadd.f32 %v1556, %v1664
    %v1666 = vpop.f32.mrf.mxu0
    %v1667 = vpop.f32.mrf.mxu0
    %v1668 = vadd.f32 %v1556, %v1667
    %v1669 = vpop.f32.mrf.mxu0
    %1670 = vmatprep.mubr.bf16.mxu0 0
    %1671 = vmatmul.mubr.bf16.gmra.mxu0 %v1548
    %v1672 = vpop.f32.mrf.mxu0
    %v1673 = vadd.f32 %v1556, %v1672
    %v1674 = vpop.f32.mrf.mxu0
    %v1675 = vpop.f32.mrf.mxu0
    %v1676 = vadd.f32 %v1556, %v1675
    %v1677 = vpop.f32.mrf.mxu0
    %1678 = vmatprep.mubr.bf16.mxu0 0
    %1679 = vmatmul.mubr.bf16.gmra.mxu0 %v1549
    %v1680 = vpop.f32.mrf.mxu0
    %v1681 = vadd.f32 %v1556, %v1680
    %v1682 = vpop.f32.mrf.mxu0
    %v1683 = vpop.f32.mrf.mxu0
    %v1684 = vadd.f32 %v1556, %v1683
    %v1685 = vpop.f32.mrf.mxu0
    %1686 = vmatprep.mubr.bf16.mxu0 0
    %1687 = vmatmul.mubr.bf16.gmra.mxu0 %v1550
    %v1688 = vpop.f32.mrf.mxu0
    %v1689 = vadd.f32 %v1556, %v1688
    %v1690 = vpop.f32.mrf.mxu0
    %v1691 = vpop.f32.mrf.mxu0
    %v1692 = vadd.f32 %v1556, %v1691
    %v1693 = vpop.f32.mrf.mxu0
    %1694 = vmatprep.mubr.bf16.mxu0 0
    %1695 = vmatmul.mubr.bf16.gmra.mxu0 %v1551
    %v1696 = vpop.f32.mrf.mxu0
    %v1697 = vadd.f32 %v1556, %v1696
    %v1698 = vpop.f32.mrf.mxu0
    %v1699 = vpop.f32.mrf.mxu0
    %v1700 = vadd.f32 %v1556, %v1699
    %v1701 = vpop.f32.mrf.mxu0
    %1702 = vdwg.mxu0
    %vm1703 = vcmask 23552
    %1704 = vst.msk [vmem:[%s7] sm:$0xff] %vm1703, %v1641
    %1705 = vst.msk [vmem:[%s7 + $0x8] sm:$0xff] %vm1703, %v1644
    %1706 = vst.msk [vmem:[%s7 + $0x10] sm:$0xff] %vm1703, %v1649
    %1707 = vst.msk [vmem:[%s7 + $0x18] sm:$0xff] %vm1703, %v1652
    %1708 = vst.msk [vmem:[%s7 + $0x20] sm:$0xff] %vm1703, %v1657
    %1709 = vst.msk [vmem:[%s7 + $0x28] sm:$0xff] %vm1703, %v1660
    %1710 = vst.msk [vmem:[%s7 + $0x30] sm:$0xff] %vm1703, %v1665
    %1711 = vst.msk [vmem:[%s7 + $0x38] sm:$0xff] %vm1703, %v1668
    %1712 = vst.msk [vmem:[%s7 + $0x40] sm:$0xff] %vm1703, %v1673
    %1713 = vst.msk [vmem:[%s7 + $0x48] sm:$0xff] %vm1703, %v1676
    %1714 = vst.msk [vmem:[%s7 + $0x50] sm:$0xff] %vm1703, %v1681
    %1715 = vst.msk [vmem:[%s7 + $0x58] sm:$0xff] %vm1703, %v1684
    %1716 = vst.msk [vmem:[%s7 + $0x60] sm:$0xff] %vm1703, %v1689
    %1717 = vst.msk [vmem:[%s7 + $0x68] sm:$0xff] %vm1703, %v1692
    %1718 = vst.msk [vmem:[%s7 + $0x70] sm:$0xff] %vm1703, %v1697
    %1719 = vst.msk [vmem:[%s7 + $0x78] sm:$0xff] %vm1703, %v1700
    // Predicated region
    $region34: #{tpu_custom_call.1} parent=1 // pred_check
      _
    $region35: #{tpu_custom_call.1} parent=1 // pred_check_branch
      %1721 = sbr.rel (0) target = $region37
    $region36: #{tpu_custom_call.1} parent=1 // pred_region
      _
    $region37: #{tpu_custom_call.1} parent=1 // pred_fallthru
      _
    // Predicated region
    $region38: #{tpu_custom_call.1} parent=1 // pred_check
      _
    $region39: #{tpu_custom_call.1} parent=1 // pred_check_branch
      %1723 = sbr.rel (0) target = $region41
    $region40: #{tpu_custom_call.1} parent=1 // pred_region
      _
    $region41: #{tpu_custom_call.1} parent=1 // pred_fallthru
      _
    %1724 = vsyncpa [#allocation3], 1

</llo_original>
